<compile_context>
chip_gen: v5e
topology: v5e:2x2
jax: 0.10.0
libtpu: 0.0.40
codegen_flags: <defaults>
</compile_context>

<pallas_src>
import functools

import jax
import jax.numpy as jnp
from jax import lax
from jax.experimental import pallas as pl
from jax.experimental.pallas import tpu as pltpu

KERNEL = 5   # all convs in VoiceDecoder use kernel_size=5
LANE = 128


def _round_up(n, m):
    return ((n + m - 1) // m) * m


# ------------------------------ fused kernel ------------------------------- #

def _fused_decoder_kernel(x_ref, wct_ref, bct_ref, w1_ref, b1_ref, w2_ref, b2_ref,
                          std_ref, mean_ref, inde_ref, indo_ref, o_ref,
                          *, tt, t_true, ap):
    """One time-tile of: polyphase ConvTranspose1d -> Conv1d -> Conv1d -> head.

    Channel-last layout [B, time, C].  Even and odd output phases live side by
    side in the channel (N) dimension of every stage, so each stage is a single
    MXU matmul with N >= 256 and a 3-slice (non-overlapping) activation stack.
    Taps are folded into the contraction dim; bf16 operands, f32 accumulation.
    """
    i = pl.program_id(0)
    m_ct = tt + 4      # ConvTranspose rows (per phase) needed by this tile
    m_h1 = tt + 2      # Conv1 rows (per phase)

    base = i * tt
    if tt % 8 == 0:
        base = pl.multiple_of(base, 8)
    xw = x_ref[:, pl.ds(base, tt + 6), :]            # [B, tt+6, hp]  (halo = 3)

    # Rows whose original-sequence index m falls outside [0, T) are the zero
    # padding the next conv stage must see -> mask them to 0.  One iota, reused.
    r = lax.broadcasted_iota(jnp.int32, (1, m_ct, 1), 1)
    m_abs = i * tt - 2 + r                            # absolute m of CT rows
    mask_ct = jnp.logical_and(m_abs >= 0, m_abs < t_true)   # (1, m_ct, 1)
    mask_h1 = mask_ct[:, 1:1 + m_h1]                        # (1, m_h1, 1)

    # --- ConvTranspose1d(H, H, k=5, s=2, p=2, op=1) + ReLU, fused even|odd ---
    #   even (row 2m): x[m-1]@W4 + x[m]@W2 + x[m+1]@W0
    #   odd  (row 2m+1):            x[m]@W3 + x[m+1]@W1
    x_stk = jnp.concatenate(
        [xw[:, 0:m_ct], xw[:, 1:1 + m_ct], xw[:, 2:2 + m_ct]], axis=-1)
    ct = jnp.einsum("btk,kn->btn", x_stk, wct_ref[...],
                    preferred_element_type=jnp.float32)
    ct = jnp.maximum(ct + bct_ref[...], 0.0).astype(jnp.bfloat16)
    ct = jnp.where(mask_ct, ct, 0.0)                  # [B, m_ct, 2hp] bf16

    # --- Conv1d(H, H//2, k=5, p=2) + ReLU, fused even|odd -------------------
    c_stk = jnp.concatenate(
        [ct[:, 0:m_h1], ct[:, 1:1 + m_h1], ct[:, 2:2 + m_h1]], axis=-1)
    h1 = jnp.einsum("btk,kn->btn", c_stk, w1_ref[...],
                    preferred_element_type=jnp.float32)
    h1 = jnp.maximum(h1 + b1_ref[...], 0.0).astype(jnp.bfloat16)
    h1 = jnp.where(mask_h1, h1, 0.0)                  # [B, m_h1, 2cp] bf16

    # --- Conv1d(H//2, A, k=5, p=2) + WORLDNorm.unnormalize + f0 gate --------
    h_stk = jnp.concatenate(
        [h1[:, 0:tt], h1[:, 1:1 + tt], h1[:, 2:2 + tt]], axis=-1)
    acc = jnp.einsum("btk,kn->btn", h_stk, w2_ref[...],
                     preferred_element_type=jnp.float32) + b2_ref[...]

    y = acc * std_ref[...] + mean_ref[...]            # unnormalize
    gate_e = acc[:, :, 0:1] < 0.0                     # raw hasf0 (even phase)
    gate_o = acc[:, :, ap:ap + 1] < 0.0               # raw hasf0 (odd phase)
    kill = jnp.logical_or(
        jnp.logical_and(inde_ref[...] > 0.0, gate_e),
        jnp.logical_and(indo_ref[...] > 0.0, gate_o))
    o_ref[...] = jnp.where(kill, 0.0, y)              # [B, tt, 2ap] f32


# -------------------------- parameter construction ------------------------- #

def init_params(key, vocab_size, hidden_size, logspc_size, codeap_size):
    half = hidden_size // 2
    audio = 2 + logspc_size + codeap_size
    keys = jax.random.split(key, 8)

    def u(k, shape, fan):
        bound = 1.0 / jnp.sqrt(jnp.float32(fan))
        return jax.random.uniform(k, shape, jnp.float32, -bound, bound)

    return dict(
        emb=0.1 * jax.random.normal(keys[0], (vocab_size, hidden_size), jnp.float32),
        # ConvTranspose1d(H, H, 5, stride=2, padding=2, output_padding=1)
        # torch weight layout: [Cin, Cout, k]
        ct_w=u(keys[1], (hidden_size, hidden_size, KERNEL), hidden_size * KERNEL),
        ct_b=u(keys[2], (hidden_size,), hidden_size * KERNEL),
        # Conv1d(H, H//2, 5, padding=2): torch layout [Cout, Cin, k]
        c1_w=u(keys[3], (half, hidden_size, KERNEL), hidden_size * KERNEL),
        c1_b=u(keys[4], (half,), hidden_size * KERNEL),
        # Conv1d(H//2, audio, 5, padding=2)
        c2_w=u(keys[5], (audio, half, KERNEL), half * KERNEL),
        c2_b=u(keys[6], (audio,), half * KERNEL),
        # WORLDNorm buffers
        f0_std=jnp.full((1,), 50.0, jnp.float32),
        f0_mean=jnp.full((1,), 120.0, jnp.float32),
        logspc_std=jnp.abs(jax.random.normal(keys[7], (logspc_size,), jnp.float32)) + 1.0,
        logspc_mean=jnp.full((logspc_size,), -5.0, jnp.float32),
        codeap_std=jnp.full((codeap_size,), 2.0, jnp.float32),
        codeap_mean=jnp.full((codeap_size,), -1.0, jnp.float32),
    )


def prepare_params(params, logspc_size, codeap_size):
    """One-time repack: lane-pad all channel dims to 128, build the even|odd
    N-fused tap-stacked weights, cast MXU operands to bf16, and pre-build the
    tiled std/mean/bias/indicator vectors."""
    H = params["emb"].shape[1]
    half = params["c1_w"].shape[0]
    audio = 2 + logspc_size + codeap_size
    hp = _round_up(H, LANE)
    cp = _round_up(half, LANE)
    ap = _round_up(audio, LANE)

    emb = jnp.pad(params["emb"], ((0, 0), (0, hp - H)))

    # ConvTranspose: [Cin, Cout, k]; fused polyphase weight [3hp, 2hp]
    ct = jnp.pad(params["ct_w"], ((0, hp - H), (0, hp - H), (0, 0)))
    z_h = jnp.zeros((hp, hp), jnp.float32)
    wct_e = jnp.concatenate([ct[:, :, 4], ct[:, :, 2], ct[:, :, 0]], axis=0)
    wct_o = jnp.concatenate([z_h, ct[:, :, 3], ct[:, :, 1]], axis=0)
    w_ct = jnp.concatenate([wct_e, wct_o], axis=1)                       # [3hp, 2hp]
    bct = jnp.tile(jnp.pad(params["ct_b"], (0, hp - H)), 2).reshape(1, 1, 2 * hp)

    # Conv1: [Cout, Cin, k] -> taps [k, hp, cp] -> fused [6hp, 2cp]
    c1 = jnp.pad(params["c1_w"], ((0, cp - half), (0, hp - H), (0, 0)))
    t1 = c1.transpose(2, 1, 0)
    z1 = jnp.zeros((hp, cp), jnp.float32)
    w1_e = jnp.concatenate([t1[0], t1[1], t1[2], t1[3], t1[4], z1], axis=0)
    w1_o = jnp.concatenate([z1, t1[0], t1[1], t1[2], t1[3], t1[4]], axis=0)
    w1 = jnp.concatenate([w1_e, w1_o], axis=1)                           # [6hp, 2cp]
    b1 = jnp.tile(jnp.pad(params["c1_b"], (0, cp - half)), 2).reshape(1, 1, 2 * cp)

    # Conv2: [Cout, Cin, k] -> taps [k, cp, ap] -> fused [6cp, 2ap]
    c2 = jnp.pad(params["c2_w"], ((0, ap - audio), (0, cp - half), (0, 0)))
    t2 = c2.transpose(2, 1, 0)
    z2 = jnp.zeros((cp, ap), jnp.float32)
    w2_e = jnp.concatenate([t2[0], t2[1], t2[2], t2[3], t2[4], z2], axis=0)
    w2_o = jnp.concatenate([z2, t2[0], t2[1], t2[2], t2[3], t2[4]], axis=0)
    w2 = jnp.concatenate([w2_e, w2_o], axis=1)                           # [6cp, 2ap]
    b2 = jnp.tile(jnp.pad(params["c2_b"], (0, ap - audio)), 2).reshape(1, 1, 2 * ap)

    std1 = jnp.concatenate([jnp.ones((1,), jnp.float32), params["f0_std"],
                            params["logspc_std"], params["codeap_std"],
                            jnp.ones((ap - audio,), jnp.float32)])
    mean1 = jnp.concatenate([jnp.zeros((1,), jnp.float32), params["f0_mean"],
                             params["logspc_mean"], params["codeap_mean"],
                             jnp.zeros((ap - audio,), jnp.float32)])
    std = jnp.tile(std1, 2).reshape(1, 1, 2 * ap)
    mean = jnp.tile(mean1, 2).reshape(1, 1, 2 * ap)

    # f0-channel lane indicators (channel 1 of each phase).
    ind_e = jnp.zeros((2 * ap,), jnp.float32).at[1].set(1.0).reshape(1, 1, 2 * ap)
    ind_o = jnp.zeros((2 * ap,), jnp.float32).at[ap + 1].set(1.0).reshape(1, 1, 2 * ap)

    return dict(emb=emb.astype(jnp.bfloat16),
                w_ct=w_ct.astype(jnp.bfloat16), bct=bct.astype(jnp.float32),
                w1=w1.astype(jnp.bfloat16), b1=b1.astype(jnp.float32),
                w2=w2.astype(jnp.bfloat16), b2=b2.astype(jnp.float32),
                std=std.astype(jnp.float32), mean=mean.astype(jnp.float32),
                ind_e=ind_e, ind_o=ind_o)


# ------------------------------ model wrapper ------------------------------ #

def predict(prep, aligntext, *, logspc_size, codeap_size, time_tile=256):
    B, T = aligntext.shape
    a_pad = prep["w2"].shape[1] // 2     # static lane-padded audio size

    # Pick the time tile: multiple of 8, and at least 2 tiles when T allows so
    # both v7x TensorCores get work (dimension_semantics=("parallel",)).
    if T <= 8:
        tt = T
    else:
        tt = min(max(8, (time_tile // 8) * 8), _round_up(-(-T // 2), 8))
    ntiles = -(-T // tt)
    t_pad = tt * ntiles

    # Embedding as an XLA gather (O(B*T*H)); the Pallas pipeline starts at the
    # first conv.  Zero-pad the time axis with the halo (3) and tile remainder.
    x = jnp.take(prep["emb"], aligntext, axis=0)                  # [B, T, hp] bf16
    x = jnp.pad(x, ((0, 0), (3, (t_pad - T) + 3), (0, 0)))

    def full(a):
        nd = a.ndim
        return pl.BlockSpec(a.shape, lambda i, _nd=nd: (0,) * _nd)

    kern = functools.partial(_fused_decoder_kernel, tt=tt, t_true=T, ap=a_pad)
    out = pl.pallas_call(
        kern,
        grid=(ntiles,),
        in_specs=[full(x), full(prep["w_ct"]), full(prep["bct"]),
                  full(prep["w1"]), full(prep["b1"]),
                  full(prep["w2"]), full(prep["b2"]),
                  full(prep["std"]), full(prep["mean"]),
                  full(prep["ind_e"]), full(prep["ind_o"])],
        out_specs=pl.BlockSpec((B, tt, 2 * a_pad), lambda i: (0, i, 0)),
        out_shape=jax.ShapeDtypeStruct((B, t_pad, 2 * a_pad), jnp.float32),
        compiler_params=pltpu.CompilerParams(
            dimension_semantics=("parallel",),       # time tiles are independent
            vmem_limit_bytes=32 * 1024 * 1024),
    )(x, prep["w_ct"], prep["bct"], prep["w1"], prep["b1"], prep["w2"],
      prep["b2"], prep["std"], prep["mean"], prep["ind_e"], prep["ind_o"])

    # Even/odd interleave: bitcast-free reshape [B, t_pad, 2*A] -> [B, 2*t_pad, A]
    # (channels are [even_A | odd_A]); then pure slicing for the channel split.
    y = out.reshape(B, 2 * t_pad, a_pad)[:, :2 * T, :]
    f0 = y[:, :, 1]
    logspc = y[:, :, 2:2 + logspc_size]
    codeap = y[:, :, 2 + logspc_size:2 + logspc_size + codeap_size]
    return f0, logspc, codeap


# ------------------------------ f32 reference ------------------------------ #

def reference_predict(params, aligntext, logspc_size, codeap_size):
    x = jnp.take(params["emb"], aligntext, axis=0)                 # [B, T, H]
    B, T, H = x.shape
    k, pad = KERNEL, 2
    # ConvTranspose1d(H, H, 5, s=2, p=2, op=1) as zero-upsample + conv
    up = jnp.zeros((B, 2 * T - 1, H), jnp.float32).at[:, ::2, :].set(x)
    xp = jnp.pad(up, ((0, 0), (2, 3), (0, 0)))
    wt = jnp.flip(params["ct_w"], axis=2).transpose(2, 0, 1)
    y = sum(jnp.einsum("btc,cd->btd", xp[:, j:j + 2 * T, :], wt[j])
            for j in range(k)) + params["ct_b"]
    y = jnp.maximum(y, 0.0)
    w1 = params["c1_w"].transpose(2, 1, 0)
    yp = jnp.pad(y, ((0, 0), (pad, pad), (0, 0)))
    h = sum(jnp.einsum("btc,cd->btd", yp[:, j:j + 2 * T, :], w1[j])
            for j in range(k)) + params["c1_b"]
    h = jnp.maximum(h, 0.0)
    w2 = params["c2_w"].transpose(2, 1, 0)
    hpad = jnp.pad(h, ((0, 0), (pad, pad), (0, 0)))
    o = sum(jnp.einsum("btc,cd->btd", hpad[:, j:j + 2 * T, :], w2[j])
            for j in range(k)) + params["c2_b"]
    hasf0 = o[:, :, 0]
    f0 = o[:, :, 1] * params["f0_std"][0] + params["f0_mean"][0]
    logspc = o[:, :, 2:2 + logspc_size] * params["logspc_std"] + params["logspc_mean"]
    codeap = o[:, :, 2 + logspc_size:] * params["codeap_std"] + params["codeap_mean"]
    f0 = jnp.where(hasf0 < 0.0, 0.0, f0)
    return f0, logspc, codeap


if __name__ == "__main__":
    key = jax.random.PRNGKey(0)
    B, T = 2, 16
    vocab_size, hidden_size = 16, 32
    logspc_size, codeap_size = 9, 2

    pkey, dkey = jax.random.split(key)
    params = init_params(pkey, vocab_size, hidden_size, logspc_size, codeap_size)
    prep = prepare_params(params, logspc_size, codeap_size)
    aligntext = jax.random.randint(dkey, (B, T), 0, vocab_size, dtype=jnp.int32)

    # time_tile=8 -> 2 time tiles, exercising the tiled/pipelined path.
    fn = jax.jit(functools.partial(predict, logspc_size=logspc_size,
                                   codeap_size=codeap_size, time_tile=8))
    f0, logspc, codeap = fn(prep, aligntext)
    jax.block_until_ready((f0, logspc, codeap))

    assert f0.shape == (B, 2 * T)
    assert logspc.shape == (B, 2 * T, logspc_size)
    assert codeap.shape == (B, 2 * T, codeap_size)
    assert bool(jnp.all(jnp.isfinite(f0)))

    # f32 reference check (kernel uses bf16 MXU operands -> loose tolerance).
    # f0 is not compared elementwise: the hasf0<0 gate can flip for samples
    # where |hasf0| is within bf16 rounding of zero.
    f0_r, ls_r, ca_r = reference_predict(params, aligntext, logspc_size, codeap_size)
    assert float(jnp.max(jnp.abs(logspc - ls_r))) < 0.25
    assert float(jnp.max(jnp.abs(codeap - ca_r))) < 0.25

    print("KERNEL_OK")
</pallas_src>

<mosaic_0001>
module attributes {stable_mosaic.version = 11 : i64} {
  func.func @_fused_decoder_kernel(%arg0: i32, %arg1: memref<2x22x128xbf16, #tpu.memory_space<vmem>>, %arg2: memref<384x256xbf16, #tpu.memory_space<vmem>>, %arg3: memref<1x1x256xf32, #tpu.memory_space<vmem>>, %arg4: memref<768x256xbf16, #tpu.memory_space<vmem>>, %arg5: memref<1x1x256xf32, #tpu.memory_space<vmem>>, %arg6: memref<768x256xbf16, #tpu.memory_space<vmem>>, %arg7: memref<1x1x256xf32, #tpu.memory_space<vmem>>, %arg8: memref<1x1x256xf32, #tpu.memory_space<vmem>>, %arg9: memref<1x1x256xf32, #tpu.memory_space<vmem>>, %arg10: memref<1x1x256xf32, #tpu.memory_space<vmem>>, %arg11: memref<1x1x256xf32, #tpu.memory_space<vmem>>, %arg12: memref<2x8x256xf32, #tpu.memory_space<vmem>>) attributes {dimension_semantics = [#tpu.dimension_semantics<parallel>], iteration_bounds = array<i64: 2>, scalar_prefetch = 0 : i64, scratch_operands = 0 : i64, tpu.core_type = #tpu.core_type<tc>, window_params = [{pipeline_mode = #tpu.pipeline_mode<synchronous>, transform_indices = @transform_0, window_bounds = array<i64: 2, 22, 128>}, {pipeline_mode = #tpu.pipeline_mode<synchronous>, transform_indices = @transform_1, window_bounds = array<i64: 384, 256>}, {pipeline_mode = #tpu.pipeline_mode<synchronous>, transform_indices = @transform_2, window_bounds = array<i64: 1, 1, 256>}, {pipeline_mode = #tpu.pipeline_mode<synchronous>, transform_indices = @transform_3, window_bounds = array<i64: 768, 256>}, {pipeline_mode = #tpu.pipeline_mode<synchronous>, transform_indices = @transform_4, window_bounds = array<i64: 1, 1, 256>}, {pipeline_mode = #tpu.pipeline_mode<synchronous>, transform_indices = @transform_5, window_bounds = array<i64: 768, 256>}, {pipeline_mode = #tpu.pipeline_mode<synchronous>, transform_indices = @transform_6, window_bounds = array<i64: 1, 1, 256>}, {pipeline_mode = #tpu.pipeline_mode<synchronous>, transform_indices = @transform_7, window_bounds = array<i64: 1, 1, 256>}, {pipeline_mode = #tpu.pipeline_mode<synchronous>, transform_indices = @transform_8, window_bounds = array<i64: 1, 1, 256>}, {pipeline_mode = #tpu.pipeline_mode<synchronous>, transform_indices = @transform_9, window_bounds = array<i64: 1, 1, 256>}, {pipeline_mode = #tpu.pipeline_mode<synchronous>, transform_indices = @transform_10, window_bounds = array<i64: 1, 1, 256>}, {transform_indices = @transform_11, window_bounds = array<i64: 2, 8, 256>}]} {
    %c8_i32 = arith.constant 8 : i32
    %0 = arith.muli %arg0, %c8_i32 : i32
    %1 = tpu.assume_multiple %0, 8 : i32
    %c0 = arith.constant 0 : index
    %2 = arith.index_cast %1 : i32 to index
    %c0_0 = arith.constant 0 : index
    %3 = vector.load %arg1[%c0, %2, %c0_0] : memref<2x22x128xbf16, #tpu.memory_space<vmem>>, vector<2x14x128xbf16>
    %4 = tpu.iota {dimensions = array<i32: 1>} : vector<1x12x1xi32>
    %c8_i32_1 = arith.constant 8 : i32
    %5 = arith.muli %arg0, %c8_i32_1 : i32
    %c2_i32 = arith.constant 2 : i32
    %6 = arith.subi %5, %c2_i32 : i32
    %7 = vector.broadcast %6 : i32 to vector<1x12x1xi32>
    %8 = arith.addi %7, %4 : vector<1x12x1xi32>
    %c0_i32 = arith.constant 0 : i32
    %9 = vector.broadcast %c0_i32 : i32 to vector<1x12x1xi32>
    %10 = arith.cmpi sge, %8, %9 : vector<1x12x1xi32>
    %c16_i32 = arith.constant 16 : i32
    %11 = vector.broadcast %c16_i32 : i32 to vector<1x12x1xi32>
    %12 = arith.cmpi slt, %8, %11 : vector<1x12x1xi32>
    %13 = arith.andi %10, %12 : vector<1x12x1xi1>
    %14 = vector.extract_strided_slice %13 {offsets = [0, 1, 0], sizes = [1, 10, 1], strides = [1, 1, 1]} : vector<1x12x1xi1> to vector<1x10x1xi1>
    %15 = vector.extract_strided_slice %3 {offsets = [0, 0, 0], sizes = [2, 12, 128], strides = [1, 1, 1]} : vector<2x14x128xbf16> to vector<2x12x128xbf16>
    %16 = vector.extract_strided_slice %3 {offsets = [0, 1, 0], sizes = [2, 12, 128], strides = [1, 1, 1]} : vector<2x14x128xbf16> to vector<2x12x128xbf16>
    %17 = vector.extract_strided_slice %3 {offsets = [0, 2, 0], sizes = [2, 12, 128], strides = [1, 1, 1]} : vector<2x14x128xbf16> to vector<2x12x128xbf16>
    %18 = tpu.concatenate %15, %16, %17 in 2 : vector<2x12x128xbf16>, vector<2x12x128xbf16>, vector<2x12x128xbf16> -> vector<2x12x384xbf16>
    %c0_2 = arith.constant 0 : index
    %c0_3 = arith.constant 0 : index
    %19 = vector.load %arg2[%c0_2, %c0_3] : memref<384x256xbf16, #tpu.memory_space<vmem>>, vector<384x256xbf16>
    "tpu.trace_start"() <{level = 10 : i32, message = "btk,kn->btn"}> : () -> ()
    %cst = arith.constant dense<0.000000e+00> : vector<2x12x256xf32>
    %20 = tpu.matmul %18, %19, %cst {dimension_numbers = #tpu.dot_dimension_numbers<[2], [0], [0, 1], [1], [0, 0, 0, 1, 1, 1], [], []>} : vector<2x12x384xbf16>, vector<384x256xbf16>, vector<2x12x256xf32> -> vector<2x12x256xf32>
    "tpu.trace_stop"() : () -> ()
    %c0_4 = arith.constant 0 : index
    %c0_5 = arith.constant 0 : index
    %c0_6 = arith.constant 0 : index
    %21 = vector.load %arg3[%c0_4, %c0_5, %c0_6] : memref<1x1x256xf32, #tpu.memory_space<vmem>>, vector<1x1x256xf32>
    %22 = vector.broadcast %21 : vector<1x1x256xf32> to vector<2x12x256xf32>
    %23 = arith.addf %20, %22 : vector<2x12x256xf32>
    %cst_7 = arith.constant 0.000000e+00 : f32
    %24 = vector.broadcast %cst_7 : f32 to vector<2x12x256xf32>
    %25 = arith.maximumf %23, %24 : vector<2x12x256xf32>
    %26 = arith.truncf %25 : vector<2x12x256xf32> to vector<2x12x256xbf16>
    %cst_8 = arith.constant 0.000000e+00 : f32
    %27 = arith.truncf %cst_8 : f32 to bf16
    %28 = vector.shape_cast %13 : vector<1x12x1xi1> to vector<1x12x1xi1>
    %29 = vector.broadcast %28 : vector<1x12x1xi1> to vector<2x12x256xi1>
    %30 = vector.broadcast %27 : bf16 to vector<2x12x256xbf16>
    %31 = arith.select %29, %26, %30 : vector<2x12x256xi1>, vector<2x12x256xbf16>
    %32 = vector.extract_strided_slice %31 {offsets = [0, 0, 0], sizes = [2, 10, 256], strides = [1, 1, 1]} : vector<2x12x256xbf16> to vector<2x10x256xbf16>
    %33 = vector.extract_strided_slice %31 {offsets = [0, 1, 0], sizes = [2, 10, 256], strides = [1, 1, 1]} : vector<2x12x256xbf16> to vector<2x10x256xbf16>
    %34 = vector.extract_strided_slice %31 {offsets = [0, 2, 0], sizes = [2, 10, 256], strides = [1, 1, 1]} : vector<2x12x256xbf16> to vector<2x10x256xbf16>
    %35 = tpu.concatenate %32, %33, %34 in 2 : vector<2x10x256xbf16>, vector<2x10x256xbf16>, vector<2x10x256xbf16> -> vector<2x10x768xbf16>
    %c0_9 = arith.constant 0 : index
    %c0_10 = arith.constant 0 : index
    %36 = vector.load %arg4[%c0_9, %c0_10] : memref<768x256xbf16, #tpu.memory_space<vmem>>, vector<768x256xbf16>
    "tpu.trace_start"() <{level = 10 : i32, message = "btk,kn->btn"}> : () -> ()
    %cst_11 = arith.constant dense<0.000000e+00> : vector<2x10x256xf32>
    %37 = tpu.matmul %35, %36, %cst_11 {dimension_numbers = #tpu.dot_dimension_numbers<[2], [0], [0, 1], [1], [0, 0, 0, 1, 1, 1], [], []>} : vector<2x10x768xbf16>, vector<768x256xbf16>, vector<2x10x256xf32> -> vector<2x10x256xf32>
    "tpu.trace_stop"() : () -> ()
    %c0_12 = arith.constant 0 : index
    %c0_13 = arith.constant 0 : index
    %c0_14 = arith.constant 0 : index
    %38 = vector.load %arg5[%c0_12, %c0_13, %c0_14] : memref<1x1x256xf32, #tpu.memory_space<vmem>>, vector<1x1x256xf32>
    %39 = vector.broadcast %38 : vector<1x1x256xf32> to vector<2x10x256xf32>
    %40 = arith.addf %37, %39 : vector<2x10x256xf32>
    %cst_15 = arith.constant 0.000000e+00 : f32
    %41 = vector.broadcast %cst_15 : f32 to vector<2x10x256xf32>
    %42 = arith.maximumf %40, %41 : vector<2x10x256xf32>
    %43 = arith.truncf %42 : vector<2x10x256xf32> to vector<2x10x256xbf16>
    %cst_16 = arith.constant 0.000000e+00 : f32
    %44 = arith.truncf %cst_16 : f32 to bf16
    %45 = vector.shape_cast %14 : vector<1x10x1xi1> to vector<1x10x1xi1>
    %46 = vector.broadcast %45 : vector<1x10x1xi1> to vector<2x10x256xi1>
    %47 = vector.broadcast %44 : bf16 to vector<2x10x256xbf16>
    %48 = arith.select %46, %43, %47 : vector<2x10x256xi1>, vector<2x10x256xbf16>
    %49 = vector.extract_strided_slice %48 {offsets = [0, 0, 0], sizes = [2, 8, 256], strides = [1, 1, 1]} : vector<2x10x256xbf16> to vector<2x8x256xbf16>
    %50 = vector.extract_strided_slice %48 {offsets = [0, 1, 0], sizes = [2, 8, 256], strides = [1, 1, 1]} : vector<2x10x256xbf16> to vector<2x8x256xbf16>
    %51 = vector.extract_strided_slice %48 {offsets = [0, 2, 0], sizes = [2, 8, 256], strides = [1, 1, 1]} : vector<2x10x256xbf16> to vector<2x8x256xbf16>
    %52 = tpu.concatenate %49, %50, %51 in 2 : vector<2x8x256xbf16>, vector<2x8x256xbf16>, vector<2x8x256xbf16> -> vector<2x8x768xbf16>
    %c0_17 = arith.constant 0 : index
    %c0_18 = arith.constant 0 : index
    %53 = vector.load %arg6[%c0_17, %c0_18] : memref<768x256xbf16, #tpu.memory_space<vmem>>, vector<768x256xbf16>
    "tpu.trace_start"() <{level = 10 : i32, message = "btk,kn->btn"}> : () -> ()
    %cst_19 = arith.constant dense<0.000000e+00> : vector<2x8x256xf32>
    %54 = tpu.matmul %52, %53, %cst_19 {dimension_numbers = #tpu.dot_dimension_numbers<[2], [0], [0, 1], [1], [0, 0, 0, 1, 1, 1], [], []>} : vector<2x8x768xbf16>, vector<768x256xbf16>, vector<2x8x256xf32> -> vector<2x8x256xf32>
    "tpu.trace_stop"() : () -> ()
    %c0_20 = arith.constant 0 : index
    %c0_21 = arith.constant 0 : index
    %c0_22 = arith.constant 0 : index
    %55 = vector.load %arg7[%c0_20, %c0_21, %c0_22] : memref<1x1x256xf32, #tpu.memory_space<vmem>>, vector<1x1x256xf32>
    %56 = vector.broadcast %55 : vector<1x1x256xf32> to vector<2x8x256xf32>
    %57 = arith.addf %54, %56 : vector<2x8x256xf32>
    %c0_23 = arith.constant 0 : index
    %c0_24 = arith.constant 0 : index
    %c0_25 = arith.constant 0 : index
    %58 = vector.load %arg8[%c0_23, %c0_24, %c0_25] : memref<1x1x256xf32, #tpu.memory_space<vmem>>, vector<1x1x256xf32>
    %59 = vector.broadcast %58 : vector<1x1x256xf32> to vector<2x8x256xf32>
    %60 = arith.mulf %57, %59 : vector<2x8x256xf32>
    %c0_26 = arith.constant 0 : index
    %c0_27 = arith.constant 0 : index
    %c0_28 = arith.constant 0 : index
    %61 = vector.load %arg9[%c0_26, %c0_27, %c0_28] : memref<1x1x256xf32, #tpu.memory_space<vmem>>, vector<1x1x256xf32>
    %62 = vector.broadcast %61 : vector<1x1x256xf32> to vector<2x8x256xf32>
    %63 = arith.addf %60, %62 : vector<2x8x256xf32>
    %64 = vector.extract_strided_slice %57 {offsets = [0, 0, 0], sizes = [2, 8, 1], strides = [1, 1, 1]} : vector<2x8x256xf32> to vector<2x8x1xf32>
    %cst_29 = arith.constant 0.000000e+00 : f32
    %65 = vector.broadcast %cst_29 : f32 to vector<2x8x1xf32>
    %66 = arith.cmpf olt, %64, %65 : vector<2x8x1xf32>
    %67 = vector.extract_strided_slice %57 {offsets = [0, 0, 128], sizes = [2, 8, 1], strides = [1, 1, 1]} : vector<2x8x256xf32> to vector<2x8x1xf32>
    %cst_30 = arith.constant 0.000000e+00 : f32
    %68 = vector.broadcast %cst_30 : f32 to vector<2x8x1xf32>
    %69 = arith.cmpf olt, %67, %68 : vector<2x8x1xf32>
    %c0_31 = arith.constant 0 : index
    %c0_32 = arith.constant 0 : index
    %c0_33 = arith.constant 0 : index
    %70 = vector.load %arg10[%c0_31, %c0_32, %c0_33] : memref<1x1x256xf32, #tpu.memory_space<vmem>>, vector<1x1x256xf32>
    %cst_34 = arith.constant 0.000000e+00 : f32
    %71 = vector.broadcast %cst_34 : f32 to vector<1x1x256xf32>
    %72 = arith.cmpf ogt, %70, %71 : vector<1x1x256xf32>
    %73 = vector.broadcast %72 : vector<1x1x256xi1> to vector<2x8x256xi1>
    %74 = vector.broadcast %66 : vector<2x8x1xi1> to vector<2x8x256xi1>
    %75 = arith.andi %73, %74 : vector<2x8x256xi1>
    %c0_35 = arith.constant 0 : index
    %c0_36 = arith.constant 0 : index
    %c0_37 = arith.constant 0 : index
    %76 = vector.load %arg11[%c0_35, %c0_36, %c0_37] : memref<1x1x256xf32, #tpu.memory_space<vmem>>, vector<1x1x256xf32>
    %cst_38 = arith.constant 0.000000e+00 : f32
    %77 = vector.broadcast %cst_38 : f32 to vector<1x1x256xf32>
    %78 = arith.cmpf ogt, %76, %77 : vector<1x1x256xf32>
    %79 = vector.broadcast %78 : vector<1x1x256xi1> to vector<2x8x256xi1>
    %80 = vector.broadcast %69 : vector<2x8x1xi1> to vector<2x8x256xi1>
    %81 = arith.andi %79, %80 : vector<2x8x256xi1>
    %82 = arith.ori %75, %81 : vector<2x8x256xi1>
    %cst_39 = arith.constant 0.000000e+00 : f32
    %83 = vector.broadcast %cst_39 : f32 to vector<2x8x256xf32>
    %84 = arith.select %82, %83, %63 : vector<2x8x256xi1>, vector<2x8x256xf32>
    %c0_40 = arith.constant 0 : index
    %c0_41 = arith.constant 0 : index
    %c0_42 = arith.constant 0 : index
    %85 = vector.load %arg12[%c0_40, %c0_41, %c0_42] : memref<2x8x256xf32, #tpu.memory_space<vmem>>, vector<2x8x256xf32>
    tpu.vector_store %arg12[%c0_40, %c0_41, %c0_42], %84 {strides = array<i32>} : memref<2x8x256xf32, #tpu.memory_space<vmem>>, vector<2x8x256xf32>,
    return
  }
  func.func @transform_0(%arg0: i32) -> (i32, i32, i32) {
    %c0_i32 = arith.constant 0 : i32
    %c0_i32_0 = arith.constant 0 : i32
    %c0_i32_1 = arith.constant 0 : i32
    %c0_i32_2 = arith.constant 0 : i32
    return %c0_i32, %c0_i32_0, %c0_i32_1 : i32, i32, i32
  }
  func.func @transform_1(%arg0: i32) -> (i32, i32) {
    %c0_i32 = arith.constant 0 : i32
    %c0_i32_0 = arith.constant 0 : i32
    %c0_i32_1 = arith.constant 0 : i32
    return %c0_i32, %c0_i32_0 : i32, i32
  }
  func.func @transform_2(%arg0: i32) -> (i32, i32, i32) {
    %c0_i32 = arith.constant 0 : i32
    %c0_i32_0 = arith.constant 0 : i32
    %c0_i32_1 = arith.constant 0 : i32
    %c0_i32_2 = arith.constant 0 : i32
    return %c0_i32, %c0_i32_0, %c0_i32_1 : i32, i32, i32
  }
  func.func @transform_3(%arg0: i32) -> (i32, i32) {
    %c0_i32 = arith.constant 0 : i32
    %c0_i32_0 = arith.constant 0 : i32
    %c0_i32_1 = arith.constant 0 : i32
    return %c0_i32, %c0_i32_0 : i32, i32
  }
  func.func @transform_4(%arg0: i32) -> (i32, i32, i32) {
    %c0_i32 = arith.constant 0 : i32
    %c0_i32_0 = arith.constant 0 : i32
    %c0_i32_1 = arith.constant 0 : i32
    %c0_i32_2 = arith.constant 0 : i32
    return %c0_i32, %c0_i32_0, %c0_i32_1 : i32, i32, i32
  }
  func.func @transform_5(%arg0: i32) -> (i32, i32) {
    %c0_i32 = arith.constant 0 : i32
    %c0_i32_0 = arith.constant 0 : i32
    %c0_i32_1 = arith.constant 0 : i32
    return %c0_i32, %c0_i32_0 : i32, i32
  }
  func.func @transform_6(%arg0: i32) -> (i32, i32, i32) {
    %c0_i32 = arith.constant 0 : i32
    %c0_i32_0 = arith.constant 0 : i32
    %c0_i32_1 = arith.constant 0 : i32
    %c0_i32_2 = arith.constant 0 : i32
    return %c0_i32, %c0_i32_0, %c0_i32_1 : i32, i32, i32
  }
  func.func @transform_7(%arg0: i32) -> (i32, i32, i32) {
    %c0_i32 = arith.constant 0 : i32
    %c0_i32_0 = arith.constant 0 : i32
    %c0_i32_1 = arith.constant 0 : i32
    %c0_i32_2 = arith.constant 0 : i32
    return %c0_i32, %c0_i32_0, %c0_i32_1 : i32, i32, i32
  }
  func.func @transform_8(%arg0: i32) -> (i32, i32, i32) {
    %c0_i32 = arith.constant 0 : i32
    %c0_i32_0 = arith.constant 0 : i32
    %c0_i32_1 = arith.constant 0 : i32
    %c0_i32_2 = arith.constant 0 : i32
    return %c0_i32, %c0_i32_0, %c0_i32_1 : i32, i32, i32
  }
  func.func @transform_9(%arg0: i32) -> (i32, i32, i32) {
    %c0_i32 = arith.constant 0 : i32
    %c0_i32_0 = arith.constant 0 : i32
    %c0_i32_1 = arith.constant 0 : i32
    %c0_i32_2 = arith.constant 0 : i32
    return %c0_i32, %c0_i32_0, %c0_i32_1 : i32, i32, i32
  }
  func.func @transform_10(%arg0: i32) -> (i32, i32, i32) {
    %c0_i32 = arith.constant 0 : i32
    %c0_i32_0 = arith.constant 0 : i32
    %c0_i32_1 = arith.constant 0 : i32
    %c0_i32_2 = arith.constant 0 : i32
    return %c0_i32, %c0_i32_0, %c0_i32_1 : i32, i32, i32
  }
  func.func @transform_11(%arg0: i32) -> (i32, i32, i32) {
    %c0_i32 = arith.constant 0 : i32
    %c0_i32_0 = arith.constant 0 : i32
    %c0_i32_1 = arith.constant 0 : i32
    return %c0_i32, %arg0, %c0_i32_0 : i32, i32, i32
  }
}

</mosaic_0001>

<llo_original>
// kernel: predict.1
$region0: #{predict.1}
  #allocation0 [shape = 'u32[]', space=smem, size = 0x4, offset = 0x4, fixed_abs, tag = 'smem constant byte address 0x4 - core index']
  #allocation1 [shape = 'u32[72,128]{1,0:T(1,128)}', space=vmem, size = 0x9000, scoped, tag = 'internal scratch']
  %s0 = inlined_call_operand.vmem [shape: bf16[2,22,128], index: 0, kind: input, shape index: {}]
  %s1 = inlined_call_operand.hbm [shape: bf16[384,256], index: 1, kind: input, shape index: {}]
  %s2 = inlined_call_operand.vmem [shape: f32[1,1,256], index: 2, kind: input, shape index: {}]
  %s3 = inlined_call_operand.hbm [shape: bf16[768,256], index: 3, kind: input, shape index: {}]
  %s4 = inlined_call_operand.vmem [shape: f32[1,1,256], index: 4, kind: input, shape index: {}]
  %s5 = inlined_call_operand.hbm [shape: bf16[768,256], index: 5, kind: input, shape index: {}]
  %s6 = inlined_call_operand.vmem [shape: f32[1,1,256], index: 6, kind: input, shape index: {}]
  %s7 = inlined_call_operand.vmem [shape: f32[1,1,256], index: 7, kind: input, shape index: {}]
  %s8 = inlined_call_operand.vmem [shape: f32[1,1,256], index: 8, kind: input, shape index: {}]
  %s9 = inlined_call_operand.vmem [shape: f32[1,1,256], index: 9, kind: input, shape index: {}]
  %s10 = inlined_call_operand.vmem [shape: f32[1,1,256], index: 10, kind: input, shape index: {}]
  %s11 = inlined_call_operand.vmem [shape: f32[2,16,256], index: 11, kind: output, shape index: {}]
  %s12 = sld [smem:[#allocation0]]
  $region108: #{predict.1} parent=0
    _
  %s14 = ssub.s32 1, %s12
  %s15 = scalar_select 0, %s14, %s12
  $region1: #{predict.1} parent=0
    #allocation2 [shape = 'u8[196608]{0}', space=vmem, size = 0x30000, scoped, tag = 'input window, operand 1, single buffered']
    #allocation3 [shape = 's32[2]{0}', space=sflag, size = 0x8, scoped, tag = 'scoped memory for predict.1']
    #allocation4 [shape = 'u8[393216]{0}', space=vmem, size = 0x60000, scoped, tag = 'input window, operand 3, single buffered']
    #allocation5 [shape = 's32[1]{0}', space=sflag, size = 0x4, scoped, tag = 'scoped memory for predict.1']
    #allocation6 [shape = 'u8[393216]{0}', space=vmem, size = 0x60000, scoped, tag = 'input window, operand 5, single buffered']
    #allocation7 [shape = 'u8[32768]{0}', space=vmem, size = 0x8000, scoped, tag = 'output window, operand 0']
    %16 = vsyncpa [#allocation3], 0
    %17 = vsyncpa [#allocation5], 0
    loop: start=0, step=1, limit=4
    $region2: #{predict.1} parent=1 // loop_pre_header
      _
    $region3: #{predict.1} parent=1 // loop_header
      %s19 = sphi 0, %s23
      %p20 = scmp.ge.s32.totalorder %s19, 4
      %s27 = sphi 0, %s27
      %s29 = sphi 0, %s27
      %s30 = sphi 0, %s29
      %s44 = sphi 0, %s30
      %s48 = sphi 0, %s48
      %s50 = sphi 0, %s48
      %s51 = sphi 0, %s50
      %s65 = sphi 0, %s51
      %s69 = sphi 0, %s69
      %s71 = sphi 0, %s69
      %s72 = sphi 0, %s71
      %s86 = sphi 0, %s72
      %s90 = sphi 0, %s90
      %s92 = sphi 0, %s90
      %s93 = sphi 0, %s92
      %s107 = sphi 0, %s93
      %s111 = sphi 0, %s111
      %s113 = sphi 0, %s111
      %s114 = sphi 0, %s113
      %s128 = sphi 0, %s114
      %s132 = sphi 0, %s132
      %s134 = sphi 0, %s132
      %s135 = sphi 0, %s134
      %s149 = sphi 0, %s135
      %s153 = sphi 0, %s153
      %s155 = sphi 0, %s153
      %s156 = sphi 0, %s155
      %s170 = sphi 0, %s156
      %s174 = sphi 0, %s174
      %s176 = sphi 0, %s174
      %s177 = sphi 0, %s176
      %s191 = sphi 0, %s177
      %s195 = sphi 0, %s195
      %s197 = sphi 0, %s195
      %s198 = sphi 0, %s197
      %s212 = sphi 0, %s198
      %s216 = sphi 0, %s216
      %s218 = sphi 0, %s216
      %s219 = sphi 0, %s218
      %s233 = sphi 0, %s219
      %s237 = sphi 0, %s237
      %s239 = sphi 0, %s237
      %s240 = sphi 0, %s239
      %s254 = sphi 0, %s240
      %s260 = sphi 0, %s262
      %s263 = sphi 0, %s260
      %s264 = sphi 0, %s263
      %s280 = sphi 0, %s264
    $region4: #{predict.1} parent=1 // loop_header_branch
      %22 = sbr.rel (%p20) target = $region8
    $region5: #{predict.1} parent=1 // loop_body
      %s24 = ssub.s32 %s19, 1
      %s25 = ssub.s32 %s19, 2
      %s26 = sadd.s32 %s19, 1
      %s28 = sadd.s32 %s27, 1
      %p31 = scmp.eq.s32.totalorder %s19, 1
      %p32 = scmp.ne.s32.totalorder %s27, %s29
      %p33 = scmp.eq.s32.totalorder %s19, 0
      %p34 = por %p32, %p33
      %p35 = scmp.ne.s32.totalorder %s27, %s29
      %p36 = scmp.eq.s32.totalorder %s24, 1
      %p37 = por %p35, %p36
      %p38 = scmp.ne.s32.totalorder %s29, %s30
      %p39 = scmp.eq.s32.totalorder %s24, 0
      %p40 = por %p38, %p39
      %p41 = scmp.ne.s32.totalorder %s29, %s30
      %p42 = scmp.eq.s32.totalorder %s25, 1
      %p43 = por %p41, %p42
      %p45 = scmp.ne.s32.totalorder %s30, %s44
      %p46 = scmp.eq.s32.totalorder %s25, 0
      %p47 = por %p45, %p46
      %s49 = sadd.s32 %s48, 1
      %p52 = scmp.eq.s32.totalorder %s19, 1
      %p53 = scmp.ne.s32.totalorder %s48, %s50
      %p54 = scmp.eq.s32.totalorder %s19, 0
      %p55 = por %p53, %p54
      %p56 = scmp.ne.s32.totalorder %s48, %s50
      %p57 = scmp.eq.s32.totalorder %s24, 1
      %p58 = por %p56, %p57
      %p59 = scmp.ne.s32.totalorder %s50, %s51
      %p60 = scmp.eq.s32.totalorder %s24, 0
      %p61 = por %p59, %p60
      %p62 = scmp.ne.s32.totalorder %s50, %s51
      %p63 = scmp.eq.s32.totalorder %s25, 1
      %p64 = por %p62, %p63
      %p66 = scmp.ne.s32.totalorder %s51, %s65
      %p67 = scmp.eq.s32.totalorder %s25, 0
      %p68 = por %p66, %p67
      %s70 = sadd.s32 %s69, 1
      %p73 = scmp.eq.s32.totalorder %s19, 1
      %p74 = scmp.ne.s32.totalorder %s69, %s71
      %p75 = scmp.eq.s32.totalorder %s19, 0
      %p76 = por %p74, %p75
      %p77 = scmp.ne.s32.totalorder %s69, %s71
      %p78 = scmp.eq.s32.totalorder %s24, 1
      %p79 = por %p77, %p78
      %p80 = scmp.ne.s32.totalorder %s71, %s72
      %p81 = scmp.eq.s32.totalorder %s24, 0
      %p82 = por %p80, %p81
      %p83 = scmp.ne.s32.totalorder %s71, %s72
      %p84 = scmp.eq.s32.totalorder %s25, 1
      %p85 = por %p83, %p84
      %p87 = scmp.ne.s32.totalorder %s72, %s86
      %p88 = scmp.eq.s32.totalorder %s25, 0
      %p89 = por %p87, %p88
      %s91 = sadd.s32 %s90, 1
      %p94 = scmp.eq.s32.totalorder %s19, 1
      %p95 = scmp.ne.s32.totalorder %s90, %s92
      %p96 = scmp.eq.s32.totalorder %s19, 0
      %p97 = por %p95, %p96
      %p98 = scmp.ne.s32.totalorder %s90, %s92
      %p99 = scmp.eq.s32.totalorder %s24, 1
      %p100 = por %p98, %p99
      %p101 = scmp.ne.s32.totalorder %s92, %s93
      %p102 = scmp.eq.s32.totalorder %s24, 0
      %p103 = por %p101, %p102
      %p104 = scmp.ne.s32.totalorder %s92, %s93
      %p105 = scmp.eq.s32.totalorder %s25, 1
      %p106 = por %p104, %p105
      %p108 = scmp.ne.s32.totalorder %s93, %s107
      %p109 = scmp.eq.s32.totalorder %s25, 0
      %p110 = por %p108, %p109
      %s112 = sadd.s32 %s111, 1
      %p115 = scmp.eq.s32.totalorder %s19, 1
      %p116 = scmp.ne.s32.totalorder %s111, %s113
      %p117 = scmp.eq.s32.totalorder %s19, 0
      %p118 = por %p116, %p117
      %p119 = scmp.ne.s32.totalorder %s111, %s113
      %p120 = scmp.eq.s32.totalorder %s24, 1
      %p121 = por %p119, %p120
      %p122 = scmp.ne.s32.totalorder %s113, %s114
      %p123 = scmp.eq.s32.totalorder %s24, 0
      %p124 = por %p122, %p123
      %p125 = scmp.ne.s32.totalorder %s113, %s114
      %p126 = scmp.eq.s32.totalorder %s25, 1
      %p127 = por %p125, %p126
      %p129 = scmp.ne.s32.totalorder %s114, %s128
      %p130 = scmp.eq.s32.totalorder %s25, 0
      %p131 = por %p129, %p130
      %s133 = sadd.s32 %s132, 1
      %p136 = scmp.eq.s32.totalorder %s19, 1
      %p137 = scmp.ne.s32.totalorder %s132, %s134
      %p138 = scmp.eq.s32.totalorder %s19, 0
      %p139 = por %p137, %p138
      %p140 = scmp.ne.s32.totalorder %s132, %s134
      %p141 = scmp.eq.s32.totalorder %s24, 1
      %p142 = por %p140, %p141
      %p143 = scmp.ne.s32.totalorder %s134, %s135
      %p144 = scmp.eq.s32.totalorder %s24, 0
      %p145 = por %p143, %p144
      %p146 = scmp.ne.s32.totalorder %s134, %s135
      %p147 = scmp.eq.s32.totalorder %s25, 1
      %p148 = por %p146, %p147
      %p150 = scmp.ne.s32.totalorder %s135, %s149
      %p151 = scmp.eq.s32.totalorder %s25, 0
      %p152 = por %p150, %p151
      %s154 = sadd.s32 %s153, 1
      %p157 = scmp.eq.s32.totalorder %s19, 1
      %p158 = scmp.ne.s32.totalorder %s153, %s155
      %p159 = scmp.eq.s32.totalorder %s19, 0
      %p160 = por %p158, %p159
      %p161 = scmp.ne.s32.totalorder %s153, %s155
      %p162 = scmp.eq.s32.totalorder %s24, 1
      %p163 = por %p161, %p162
      %p164 = scmp.ne.s32.totalorder %s155, %s156
      %p165 = scmp.eq.s32.totalorder %s24, 0
      %p166 = por %p164, %p165
      %p167 = scmp.ne.s32.totalorder %s155, %s156
      %p168 = scmp.eq.s32.totalorder %s25, 1
      %p169 = por %p167, %p168
      %p171 = scmp.ne.s32.totalorder %s156, %s170
      %p172 = scmp.eq.s32.totalorder %s25, 0
      %p173 = por %p171, %p172
      %s175 = sadd.s32 %s174, 1
      %p178 = scmp.eq.s32.totalorder %s19, 1
      %p179 = scmp.ne.s32.totalorder %s174, %s176
      %p180 = scmp.eq.s32.totalorder %s19, 0
      %p181 = por %p179, %p180
      %p182 = scmp.ne.s32.totalorder %s174, %s176
      %p183 = scmp.eq.s32.totalorder %s24, 1
      %p184 = por %p182, %p183
      %p185 = scmp.ne.s32.totalorder %s176, %s177
      %p186 = scmp.eq.s32.totalorder %s24, 0
      %p187 = por %p185, %p186
      %p188 = scmp.ne.s32.totalorder %s176, %s177
      %p189 = scmp.eq.s32.totalorder %s25, 1
      %p190 = por %p188, %p189
      %p192 = scmp.ne.s32.totalorder %s177, %s191
      %p193 = scmp.eq.s32.totalorder %s25, 0
      %p194 = por %p192, %p193
      %s196 = sadd.s32 %s195, 1
      %p199 = scmp.eq.s32.totalorder %s19, 1
      %p200 = scmp.ne.s32.totalorder %s195, %s197
      %p201 = scmp.eq.s32.totalorder %s19, 0
      %p202 = por %p200, %p201
      %p203 = scmp.ne.s32.totalorder %s195, %s197
      %p204 = scmp.eq.s32.totalorder %s24, 1
      %p205 = por %p203, %p204
      %p206 = scmp.ne.s32.totalorder %s197, %s198
      %p207 = scmp.eq.s32.totalorder %s24, 0
      %p208 = por %p206, %p207
      %p209 = scmp.ne.s32.totalorder %s197, %s198
      %p210 = scmp.eq.s32.totalorder %s25, 1
      %p211 = por %p209, %p210
      %p213 = scmp.ne.s32.totalorder %s198, %s212
      %p214 = scmp.eq.s32.totalorder %s25, 0
      %p215 = por %p213, %p214
      %s217 = sadd.s32 %s216, 1
      %p220 = scmp.eq.s32.totalorder %s19, 1
      %p221 = scmp.ne.s32.totalorder %s216, %s218
      %p222 = scmp.eq.s32.totalorder %s19, 0
      %p223 = por %p221, %p222
      %p224 = scmp.ne.s32.totalorder %s216, %s218
      %p225 = scmp.eq.s32.totalorder %s24, 1
      %p226 = por %p224, %p225
      %p227 = scmp.ne.s32.totalorder %s218, %s219
      %p228 = scmp.eq.s32.totalorder %s24, 0
      %p229 = por %p227, %p228
      %p230 = scmp.ne.s32.totalorder %s218, %s219
      %p231 = scmp.eq.s32.totalorder %s25, 1
      %p232 = por %p230, %p231
      %p234 = scmp.ne.s32.totalorder %s219, %s233
      %p235 = scmp.eq.s32.totalorder %s25, 0
      %p236 = por %p234, %p235
      %s238 = sadd.s32 %s237, 1
      %p241 = scmp.eq.s32.totalorder %s19, 1
      %p242 = scmp.ne.s32.totalorder %s237, %s239
      %p243 = scmp.eq.s32.totalorder %s19, 0
      %p244 = por %p242, %p243
      %p245 = scmp.ne.s32.totalorder %s237, %s239
      %p246 = scmp.eq.s32.totalorder %s24, 1
      %p247 = por %p245, %p246
      %p248 = scmp.ne.s32.totalorder %s239, %s240
      %p249 = scmp.eq.s32.totalorder %s24, 0
      %p250 = por %p248, %p249
      %p251 = scmp.ne.s32.totalorder %s239, %s240
      %p252 = scmp.eq.s32.totalorder %s25, 1
      %p253 = por %p251, %p252
      %p255 = scmp.ne.s32.totalorder %s240, %s254
      %p256 = scmp.eq.s32.totalorder %s25, 0
      %p257 = por %p255, %p256
      %s258 = ssub.s32 %s19, %s26
      %p259 = scmp.eq.s32.totalorder %s258, 0
      %s261 = sadd.s32 %s260, 1
      %s262 = scalar_select %p259, %s260, %s261
      %p265 = pneg %p259
      %p266 = scmp.eq.s32.totalorder %s19, 1
      %p267 = por %p265, %p266
      %p268 = scmp.ne.s32.totalorder %s260, %s263
      %p269 = scmp.eq.s32.totalorder %s19, 0
      %p270 = por %p268, %p269
      %p271 = scmp.ne.s32.totalorder %s260, %s263
      %p272 = scmp.eq.s32.totalorder %s24, 1
      %p273 = por %p271, %p272
      %p274 = scmp.ne.s32.totalorder %s263, %s264
      %p275 = scmp.eq.s32.totalorder %s24, 0
      %p276 = por %p274, %p275
      %p277 = scmp.ne.s32.totalorder %s263, %s264
      %p278 = scmp.eq.s32.totalorder %s25, 1
      %p279 = por %p277, %p278
      %p281 = scmp.ne.s32.totalorder %s264, %s280
      %p282 = scmp.eq.s32.totalorder %s25, 0
      %p283 = por %p281, %p282
      %p284 = scmp.le.s32.totalorder 1, %s19
      %p285 = scmp.lt.s32.totalorder %s19, 3
      %p286 = pnand %p284, %p285
      %p287 = pneg %p286
      // Predicated region
      $region9: #{predict.1} parent=5 // pred_check
        _
      $region10: #{predict.1} parent=5 // pred_check_branch
        %289 = sbr.rel (%p286) target = $region12
      $region11: #{predict.1} parent=5 // pred_region
        %s290 = ssub.s32 %s19, 1
        // Predicated region
        $region13: #{predict.1} parent=11 // pred_check
          %p291 = pneg %p40
        $region14: #{predict.1} parent=11 // pred_check_branch
          %293 = sbr.rel (%p291) target = $region16
        $region15: #{predict.1} parent=11 // pred_region
          _
        $region16: #{predict.1} parent=11 // pred_fallthru
          _
        // Predicated region
        $region17: #{predict.1} parent=11 // pred_check
          %p294 = pneg %p61
        $region18: #{predict.1} parent=11 // pred_check_branch
          %296 = sbr.rel (%p294) target = $region20
        $region19: #{predict.1} parent=11 // pred_region
          %298 = vsyncadd [#allocation3], 0
          %s299 = sshll.u32 %s1, 4
          %s300 = int_to_ptr.hbm [resolvable:$true] %s299
          %s301 = sshll.u32 [#allocation2], 4
          %s302 = int_to_ptr.vmem [resolvable:$true] %s301
          %307 = dma.hbm_to_vmem [thread:$0]  %s300, 6144, %s302, [#allocation3], 128, 128, 8
        $region20: #{predict.1} parent=11 // pred_fallthru
          _
        // Predicated region
        $region21: #{predict.1} parent=11 // pred_check
          %p308 = pneg %p82
        $region22: #{predict.1} parent=11 // pred_check_branch
          %310 = sbr.rel (%p308) target = $region24
        $region23: #{predict.1} parent=11 // pred_region
          _
        $region24: #{predict.1} parent=11 // pred_fallthru
          _
        // Predicated region
        $region25: #{predict.1} parent=11 // pred_check
          %p311 = pneg %p103
        $region26: #{predict.1} parent=11 // pred_check_branch
          %313 = sbr.rel (%p311) target = $region28
        $region27: #{predict.1} parent=11 // pred_region
          %315 = vsyncadd [#allocation5], 0
          %s316 = sshll.u32 %s3, 4
          %s317 = int_to_ptr.hbm [resolvable:$true] %s316
          %s318 = sshll.u32 [#allocation4], 4
          %s319 = int_to_ptr.vmem [resolvable:$true] %s318
          %324 = dma.hbm_to_vmem [thread:$0]  %s317, 12288, %s319, [#allocation5], 128, 128, 8
        $region28: #{predict.1} parent=11 // pred_fallthru
          _
        // Predicated region
        $region29: #{predict.1} parent=11 // pred_check
          %p325 = pneg %p124
        $region30: #{predict.1} parent=11 // pred_check_branch
          %327 = sbr.rel (%p325) target = $region32
        $region31: #{predict.1} parent=11 // pred_region
          _
        $region32: #{predict.1} parent=11 // pred_fallthru
          _
        // Predicated region
        $region33: #{predict.1} parent=11 // pred_check
          %p328 = pneg %p145
        $region34: #{predict.1} parent=11 // pred_check_branch
          %330 = sbr.rel (%p328) target = $region36
        $region35: #{predict.1} parent=11 // pred_region
          %332 = vsyncadd [#allocation5], 0
          %s333 = sshll.u32 %s5, 4
          %s334 = int_to_ptr.hbm [resolvable:$true] %s333
          %s335 = sshll.u32 [#allocation6], 4
          %s336 = int_to_ptr.vmem [resolvable:$true] %s335
          %341 = dma.hbm_to_vmem [thread:$0]  %s334, 12288, %s336, [#allocation5], 128, 128, 8
        $region36: #{predict.1} parent=11 // pred_fallthru
          _
        // Predicated region
        $region37: #{predict.1} parent=11 // pred_check
          %p342 = pneg %p166
        $region38: #{predict.1} parent=11 // pred_check_branch
          %344 = sbr.rel (%p342) target = $region40
        $region39: #{predict.1} parent=11 // pred_region
          _
        $region40: #{predict.1} parent=11 // pred_fallthru
          _
        // Predicated region
        $region41: #{predict.1} parent=11 // pred_check
          %p345 = pneg %p187
        $region42: #{predict.1} parent=11 // pred_check_branch
          %347 = sbr.rel (%p345) target = $region44
        $region43: #{predict.1} parent=11 // pred_region
          _
        $region44: #{predict.1} parent=11 // pred_fallthru
          _
        // Predicated region
        $region45: #{predict.1} parent=11 // pred_check
          %p348 = pneg %p208
        $region46: #{predict.1} parent=11 // pred_check_branch
          %350 = sbr.rel (%p348) target = $region48
        $region47: #{predict.1} parent=11 // pred_region
          _
        $region48: #{predict.1} parent=11 // pred_fallthru
          _
        // Predicated region
        $region49: #{predict.1} parent=11 // pred_check
          %p351 = pneg %p229
        $region50: #{predict.1} parent=11 // pred_check_branch
          %353 = sbr.rel (%p351) target = $region52
        $region51: #{predict.1} parent=11 // pred_region
          _
        $region52: #{predict.1} parent=11 // pred_fallthru
          _
        // Predicated region
        $region53: #{predict.1} parent=11 // pred_check
          %p354 = pneg %p250
        $region54: #{predict.1} parent=11 // pred_check_branch
          %356 = sbr.rel (%p354) target = $region56
        $region55: #{predict.1} parent=11 // pred_region
          _
        $region56: #{predict.1} parent=11 // pred_fallthru
          _
      $region12: #{predict.1} parent=5 // pred_fallthru
        _
      %p357 = scmp.lt.s32.totalorder %s19, 2
      // Predicated region
      $region57: #{predict.1} parent=5 // pred_check
        %p358 = pneg %p357
      $region58: #{predict.1} parent=5 // pred_check_branch
        %360 = sbr.rel (%p358) target = $region60
      $region59: #{predict.1} parent=5 // pred_region
        _
      $region60: #{predict.1} parent=5 // pred_fallthru
        _
      %p361 = scmp.le.s32.totalorder 1, %s19
      %p362 = scmp.lt.s32.totalorder %s19, 3
      %p363 = pnand %p361, %p362
      %p364 = pneg %p363
      // Predicated region
      $region61: #{predict.1} parent=5 // pred_check
        _
      $region62: #{predict.1} parent=5 // pred_check_branch
        %366 = sbr.rel (%p363) target = $region64
      $region63: #{predict.1} parent=5 // pred_region
        %s367 = ssub.s32 %s19, 1
        // Predicated region
        $region65: #{predict.1} parent=63 // pred_check
          %p368 = pneg %p61
        $region66: #{predict.1} parent=63 // pred_check_branch
          %370 = sbr.rel (%p368) target = $region68
        $region67: #{predict.1} parent=63 // pred_region
          %372 = dma.done [#allocation3], 6144
        $region68: #{predict.1} parent=63 // pred_fallthru
          _
        // Predicated region
        $region69: #{predict.1} parent=63 // pred_check
          %p373 = pneg %p103
        $region70: #{predict.1} parent=63 // pred_check_branch
          %375 = sbr.rel (%p373) target = $region72
        $region71: #{predict.1} parent=63 // pred_region
          %377 = dma.done [#allocation5], 12288
        $region72: #{predict.1} parent=63 // pred_fallthru
          _
        // Predicated region
        $region73: #{predict.1} parent=63 // pred_check
          %p378 = pneg %p145
        $region74: #{predict.1} parent=63 // pred_check_branch
          %380 = sbr.rel (%p378) target = $region76
        $region75: #{predict.1} parent=63 // pred_region
          %382 = dma.done [#allocation5], 12288
        $region76: #{predict.1} parent=63 // pred_fallthru
          _
        %p383 = pneg %p40
        %p384 = pneg %p37
        %p385 = pneg %p61
        %p386 = pneg %p58
        %p387 = pneg %p82
        %p388 = pneg %p79
        %p389 = pneg %p103
        %p390 = pneg %p100
        %p391 = pneg %p124
        %p392 = pneg %p121
        %p393 = pneg %p145
        %p394 = pneg %p142
        %p395 = pneg %p166
        %p396 = pneg %p163
        %p397 = pneg %p187
        %p398 = pneg %p184
        %p399 = pneg %p208
        %p400 = pneg %p205
        %p401 = pneg %p229
        %p402 = pneg %p226
        %p403 = pneg %p250
        %p404 = pneg %p247
        %p405 = pneg %p276
        %p406 = pneg %p273
        %s407 = sand.u32 %s263, 1
        %s408 = sand.u32 %s263, 1
        %s409 = smul.addr %s408, 32
        %s410 = scalar_lea.vmem [#allocation7], %s409
        %s414 = smul.u32 %s24, 8
        %s415 = sshra.s32 %s414, 3
        %s416 = sand.u32 %s414, 7
        %s417 = smul.addr %s415, 4
        %s418 = scalar_lea.vmem %s0, %s417
        %v419 = vld [vmem:[%s418] sm:$0xf]
        %v420 = vld [vmem:[%s418 + $0x4] sm:$0x7]
        %v421 = vld [vmem:[%s418 + $0xc] sm:$0xf]
        %v422 = vld [vmem:[%s418 + $0x10] sm:$0x7]
        %v423 = vlaneseq
        %v424 = vshrl.u32 %v423, 7
        %v425 = vadd.s32 %v424, 8
        %s426 = ssub.s32 %s414, 2
        %v427 = vstv %s426
        %v428 = vadd.s32 %v427, %v424
        %v429 = vadd.s32 %v427, %v425
        %vm430 = vcmp.ge.s32.totalorder %v428, 0
        %vm431 = vcmp.ge.s32.totalorder %v429, 0
        %vm432 = vcmp.lt.s32.totalorder %v428, 16
        %vm433 = vcmp.lt.s32.totalorder %v429, 16
        %vm434 = vmand %vm430, %vm432
        %vm435 = vmand %vm431, %vm433
        %v440 = vunpack.c.l.b16 %v419
        %v441 = vunpack.c.l.b16 %v420
        %v442 = vunpack.c.l.b16 %v421
        %v443 = vunpack.c.l.b16 %v422
        %v444 = vpack.c.b16 %v441, %v440
        %v445 = vpack.c.b16 %v443, %v442
        %v447 = vshrl.u32 %v444, 16
        %v449 = vshll.u32 %v444, 16
        %v451 = vrot.slane %v449, 1
        %v452 = vor.u32 %v447, %v451
        %v454 = vshrl.u32 %v445, 16
        %v456 = vshll.u32 %v445, 16
        %v458 = vrot.slane %v456, 1
        %v459 = vor.u32 %v454, %v458
        %v460 = vrot.slane %v444, 1
        %v461 = vrot.slane %v445, 1
        %v462 = vld [vmem:[#allocation2] sm:$0xff]
        %v463 = vld [vmem:[#allocation2 + $0x8] sm:$0xff]
        %v464 = vld [vmem:[#allocation2 + $0x10] sm:$0xff]
        %v465 = vld [vmem:[#allocation2 + $0x18] sm:$0xff]
        %v466 = vld [vmem:[#allocation2 + $0x20] sm:$0xff]
        %v467 = vld [vmem:[#allocation2 + $0x28] sm:$0xff]
        %v468 = vld [vmem:[#allocation2 + $0x30] sm:$0xff]
        %v469 = vld [vmem:[#allocation2 + $0x38] sm:$0xff]
        %v470 = vld [vmem:[#allocation2 + $0x40] sm:$0xff]
        %v471 = vld [vmem:[#allocation2 + $0x48] sm:$0xff]
        %v472 = vld [vmem:[#allocation2 + $0x50] sm:$0xff]
        %v473 = vld [vmem:[#allocation2 + $0x58] sm:$0xff]
        %v474 = vld [vmem:[#allocation2 + $0x60] sm:$0xff]
        %v475 = vld [vmem:[#allocation2 + $0x68] sm:$0xff]
        %v476 = vld [vmem:[#allocation2 + $0x70] sm:$0xff]
        %v477 = vld [vmem:[#allocation2 + $0x78] sm:$0xff]
        %v478 = vld [vmem:[#allocation2 + $0x80] sm:$0xff]
        %v479 = vld [vmem:[#allocation2 + $0x88] sm:$0xff]
        %v480 = vld [vmem:[#allocation2 + $0x90] sm:$0xff]
        %v481 = vld [vmem:[#allocation2 + $0x98] sm:$0xff]
        %v482 = vld [vmem:[#allocation2 + $0xa0] sm:$0xff]
        %v483 = vld [vmem:[#allocation2 + $0xa8] sm:$0xff]
        %v484 = vld [vmem:[#allocation2 + $0xb0] sm:$0xff]
        %v485 = vld [vmem:[#allocation2 + $0xb8] sm:$0xff]
        %v486 = vld [vmem:[#allocation2 + $0xc0] sm:$0xff]
        %v487 = vld [vmem:[#allocation2 + $0xc8] sm:$0xff]
        %v488 = vld [vmem:[#allocation2 + $0xd0] sm:$0xff]
        %v489 = vld [vmem:[#allocation2 + $0xd8] sm:$0xff]
        %v490 = vld [vmem:[#allocation2 + $0xe0] sm:$0xff]
        %v491 = vld [vmem:[#allocation2 + $0xe8] sm:$0xff]
        %v492 = vld [vmem:[#allocation2 + $0xf0] sm:$0xff]
        %v493 = vld [vmem:[#allocation2 + $0xf8] sm:$0xff]
        %v494 = vld [vmem:[#allocation2 + $0x100] sm:$0xff]
        %v495 = vld [vmem:[#allocation2 + $0x108] sm:$0xff]
        %v496 = vld [vmem:[#allocation2 + $0x110] sm:$0xff]
        %v497 = vld [vmem:[#allocation2 + $0x118] sm:$0xff]
        %v498 = vld [vmem:[#allocation2 + $0x120] sm:$0xff]
        %v499 = vld [vmem:[#allocation2 + $0x128] sm:$0xff]
        %v500 = vld [vmem:[#allocation2 + $0x130] sm:$0xff]
        %v501 = vld [vmem:[#allocation2 + $0x138] sm:$0xff]
        %v502 = vld [vmem:[#allocation2 + $0x140] sm:$0xff]
        %v503 = vld [vmem:[#allocation2 + $0x148] sm:$0xff]
        %v504 = vld [vmem:[#allocation2 + $0x150] sm:$0xff]
        %v505 = vld [vmem:[#allocation2 + $0x158] sm:$0xff]
        %v506 = vld [vmem:[#allocation2 + $0x160] sm:$0xff]
        %v507 = vld [vmem:[#allocation2 + $0x168] sm:$0xff]
        %v508 = vld [vmem:[#allocation2 + $0x170] sm:$0xff]
        %v509 = vld [vmem:[#allocation2 + $0x178] sm:$0xff]
        %v510 = vld [vmem:[%s2] sm:$0x3]
        %v512 = vperm.slane %v510, 0
        %v513 = vperm.slane %v510, 1
        %v514 = vrot.slane %v452, 6
        %v515 = vrot.slane %v460, 4
        %v516 = vrot.slane %v459, 6
        %v517 = vrot.slane %v461, 4
        %vm518 = vcmask 1041408
        %v520 = vsel %vm518, %v444, %v514
        %vm521 = vcmask 1043456
        %v523 = vsel %vm521, %v520, %v515
        %vm524 = vcmask 1043458
        %v525 = vsel %vm524, %v444, %v514
        %vm526 = vcmask 1045506
        %v527 = vsel %vm526, %v525, %v515
        %v529 = vrot.slane %v527, 2
        %vm530 = vcmask 1045508
        %v531 = vsel %vm530, %v444, %v514
        %v532 = vsel %vm521, %v515, %v531
        %v534 = vrot.slane %v532, 4
        %v536 = vsel %vm518, %v445, %v516
        %v538 = vsel %vm521, %v536, %v517
        %v539 = vsel %vm524, %v445, %v516
        %v540 = vsel %vm526, %v539, %v517
        %v542 = vrot.slane %v540, 2
        %v543 = vsel %vm530, %v445, %v516
        %v544 = vsel %vm521, %v517, %v543
        %v546 = vrot.slane %v544, 4
        %v547 = vrot.slane %v513, 4
        %v548 = vsel %vm521, %v512, %v547
        %v549 = vsel %vm521, %v547, %v512
        %v550 = vrot.slane %v549, 4
        %551 = vst [vmem:[#allocation1] ss:$4 sm:$0xff] %v523
        %s553 = scalar_lea.vmem [#allocation1], 1
        %554 = vst [vmem:[%s553] ss:$4 sm:$0xff] %v529
        %s556 = scalar_lea.vmem [#allocation1], 2
        %557 = vst [vmem:[%s556] ss:$4 sm:$0xff] %v534
        %s558 = scalar_lea.vmem [#allocation1], 3
        %559 = vst [vmem:[%s558] ss:$4 sm:$0xff] %v538
        %s561 = scalar_lea.vmem [#allocation1], 32
        %562 = vst [vmem:[%s561] ss:$4 sm:$0xff] %v542
        %s564 = scalar_lea.vmem [#allocation1], 33
        %565 = vst [vmem:[%s564] ss:$4 sm:$0xff] %v546
        %v566 = vld.sshfl [vmem:[#allocation1] sm:$0xff pattern:$0x73625140]
        %v567 = vld.sshfl [vmem:[#allocation1 + $0x8] sm:$0xff pattern:$0x73625140]
        %v568 = vld.sshfl [vmem:[#allocation1 + $0x10] sm:$0xff pattern:$0x73625140]
        %v569 = vld.sshfl [vmem:[#allocation1 + $0x20] sm:$0xff pattern:$0x73625140]
        %v570 = vld.sshfl [vmem:[#allocation1 + $0x28] sm:$0xff pattern:$0x73625140]
        %v571 = vld.sshfl [vmem:[#allocation1 + $0x30] sm:$0xff pattern:$0x73625140]
        %v626 = vunpack.c.l.b16 %v462
        %v627 = vunpack.c.h.b16 %v462
        %v628 = vunpack.c.l.b16 %v463
        %v629 = vunpack.c.h.b16 %v463
        %v630 = vunpack.c.l.b16 %v464
        %v631 = vunpack.c.h.b16 %v464
        %v632 = vunpack.c.l.b16 %v465
        %v633 = vunpack.c.h.b16 %v465
        %v634 = vunpack.c.l.b16 %v466
        %v635 = vunpack.c.h.b16 %v466
        %v636 = vunpack.c.l.b16 %v467
        %v637 = vunpack.c.h.b16 %v467
        %v638 = vunpack.c.l.b16 %v468
        %v639 = vunpack.c.h.b16 %v468
        %v640 = vunpack.c.l.b16 %v469
        %v641 = vunpack.c.h.b16 %v469
        %v642 = vunpack.c.l.b16 %v470
        %v643 = vunpack.c.h.b16 %v470
        %v644 = vunpack.c.l.b16 %v471
        %v645 = vunpack.c.h.b16 %v471
        %v646 = vunpack.c.l.b16 %v472
        %v647 = vunpack.c.h.b16 %v472
        %v648 = vunpack.c.l.b16 %v473
        %v649 = vunpack.c.h.b16 %v473
        %v650 = vunpack.c.l.b16 %v474
        %v651 = vunpack.c.h.b16 %v474
        %v652 = vunpack.c.l.b16 %v475
        %v653 = vunpack.c.h.b16 %v475
        %v654 = vunpack.c.l.b16 %v476
        %v655 = vunpack.c.h.b16 %v476
        %v656 = vunpack.c.l.b16 %v477
        %v657 = vunpack.c.h.b16 %v477
        %v658 = vunpack.c.l.b16 %v478
        %v659 = vunpack.c.h.b16 %v478
        %v660 = vunpack.c.l.b16 %v479
        %v661 = vunpack.c.h.b16 %v479
        %v662 = vunpack.c.l.b16 %v480
        %v663 = vunpack.c.h.b16 %v480
        %v664 = vunpack.c.l.b16 %v481
        %v665 = vunpack.c.h.b16 %v481
        %v666 = vunpack.c.l.b16 %v482
        %v667 = vunpack.c.h.b16 %v482
        %v668 = vunpack.c.l.b16 %v483
        %v669 = vunpack.c.h.b16 %v483
        %v670 = vunpack.c.l.b16 %v484
        %v671 = vunpack.c.h.b16 %v484
        %v672 = vunpack.c.l.b16 %v485
        %v673 = vunpack.c.h.b16 %v485
        %v674 = vunpack.c.l.b16 %v486
        %v675 = vunpack.c.h.b16 %v486
        %v676 = vunpack.c.l.b16 %v487
        %v677 = vunpack.c.h.b16 %v487
        %v678 = vunpack.c.l.b16 %v488
        %v679 = vunpack.c.h.b16 %v488
        %v680 = vunpack.c.l.b16 %v489
        %v681 = vunpack.c.h.b16 %v489
        %v682 = vunpack.c.l.b16 %v490
        %v683 = vunpack.c.h.b16 %v490
        %v684 = vunpack.c.l.b16 %v491
        %v685 = vunpack.c.h.b16 %v491
        %v686 = vunpack.c.l.b16 %v492
        %v687 = vunpack.c.h.b16 %v492
        %v688 = vunpack.c.l.b16 %v493
        %v689 = vunpack.c.h.b16 %v493
        %v690 = vunpack.c.l.b16 %v494
        %v691 = vunpack.c.h.b16 %v494
        %v692 = vunpack.c.l.b16 %v495
        %v693 = vunpack.c.h.b16 %v495
        %v694 = vunpack.c.l.b16 %v496
        %v695 = vunpack.c.h.b16 %v496
        %v696 = vunpack.c.l.b16 %v497
        %v697 = vunpack.c.h.b16 %v497
        %v698 = vunpack.c.l.b16 %v498
        %v699 = vunpack.c.h.b16 %v498
        %v700 = vunpack.c.l.b16 %v499
        %v701 = vunpack.c.h.b16 %v499
        %v702 = vunpack.c.l.b16 %v500
        %v703 = vunpack.c.h.b16 %v500
        %v704 = vunpack.c.l.b16 %v501
        %v705 = vunpack.c.h.b16 %v501
        %v706 = vunpack.c.l.b16 %v502
        %v707 = vunpack.c.h.b16 %v502
        %v708 = vunpack.c.l.b16 %v503
        %v709 = vunpack.c.h.b16 %v503
        %v710 = vunpack.c.l.b16 %v504
        %v711 = vunpack.c.h.b16 %v504
        %v712 = vunpack.c.l.b16 %v505
        %v713 = vunpack.c.h.b16 %v505
        %v714 = vunpack.c.l.b16 %v506
        %v715 = vunpack.c.h.b16 %v506
        %v716 = vunpack.c.l.b16 %v507
        %v717 = vunpack.c.h.b16 %v507
        %v718 = vunpack.c.l.b16 %v508
        %v719 = vunpack.c.h.b16 %v508
        %v720 = vunpack.c.l.b16 %v509
        %v721 = vunpack.c.h.b16 %v509
        %v722 = vpack.c.b16 %v628, %v626
        %v723 = vpack.c.b16 %v629, %v627
        %v724 = vpack.c.b16 %v632, %v630
        %v725 = vpack.c.b16 %v633, %v631
        %v726 = vpack.c.b16 %v636, %v634
        %v727 = vpack.c.b16 %v637, %v635
        %v728 = vpack.c.b16 %v640, %v638
        %v729 = vpack.c.b16 %v641, %v639
        %v730 = vpack.c.b16 %v644, %v642
        %v731 = vpack.c.b16 %v645, %v643
        %v732 = vpack.c.b16 %v648, %v646
        %v733 = vpack.c.b16 %v649, %v647
        %v734 = vpack.c.b16 %v652, %v650
        %v735 = vpack.c.b16 %v653, %v651
        %v736 = vpack.c.b16 %v656, %v654
        %v737 = vpack.c.b16 %v657, %v655
        %v738 = vpack.c.b16 %v660, %v658
        %v739 = vpack.c.b16 %v661, %v659
        %v740 = vpack.c.b16 %v664, %v662
        %v741 = vpack.c.b16 %v665, %v663
        %v742 = vpack.c.b16 %v668, %v666
        %v743 = vpack.c.b16 %v669, %v667
        %v744 = vpack.c.b16 %v672, %v670
        %v745 = vpack.c.b16 %v673, %v671
        %v746 = vpack.c.b16 %v676, %v674
        %v747 = vpack.c.b16 %v677, %v675
        %v748 = vpack.c.b16 %v680, %v678
        %v749 = vpack.c.b16 %v681, %v679
        %v750 = vpack.c.b16 %v684, %v682
        %v751 = vpack.c.b16 %v685, %v683
        %v752 = vpack.c.b16 %v688, %v686
        %v753 = vpack.c.b16 %v689, %v687
        %v754 = vpack.c.b16 %v692, %v690
        %v755 = vpack.c.b16 %v693, %v691
        %v756 = vpack.c.b16 %v696, %v694
        %v757 = vpack.c.b16 %v697, %v695
        %v758 = vpack.c.b16 %v700, %v698
        %v759 = vpack.c.b16 %v701, %v699
        %v760 = vpack.c.b16 %v704, %v702
        %v761 = vpack.c.b16 %v705, %v703
        %v762 = vpack.c.b16 %v708, %v706
        %v763 = vpack.c.b16 %v709, %v707
        %v764 = vpack.c.b16 %v712, %v710
        %v765 = vpack.c.b16 %v713, %v711
        %v766 = vpack.c.b16 %v716, %v714
        %v767 = vpack.c.b16 %v717, %v715
        %v768 = vpack.c.b16 %v720, %v718
        %v769 = vpack.c.b16 %v721, %v719
        %818 = vst [vmem:[#allocation1] ss:$2 sm:$0xff] %v548
        %s819 = scalar_lea.vmem [#allocation1], 1
        %820 = vst [vmem:[%s819] ss:$2 sm:$0xff] %v550
        %s821 = scalar_lea.vmem [#allocation1], 16
        %822 = vst [vmem:[%s821] ss:$2 sm:$0xff] %v548
        %s823 = scalar_lea.vmem [#allocation1], 17
        %824 = vst [vmem:[%s823] ss:$2 sm:$0xff] %v548
        %s825 = scalar_lea.vmem [#allocation1], 32
        %826 = vst [vmem:[%s825] ss:$2 sm:$0xff] %v550
        %s827 = scalar_lea.vmem [#allocation1], 33
        %828 = vst [vmem:[%s827] ss:$2 sm:$0xff] %v548
        %v829 = vld.sshfl [vmem:[#allocation1] sm:$0xff pattern:$0x75316420]
        %v830 = vld.sshfl [vmem:[#allocation1 + $0x8] sm:$0xff pattern:$0x75316420]
        %v831 = vld.sshfl [vmem:[#allocation1 + $0x10] sm:$0xff pattern:$0x75316420]
        %v832 = vld.sshfl [vmem:[#allocation1 + $0x18] sm:$0xff pattern:$0x75316420]
        %v833 = vld.sshfl [vmem:[#allocation1 + $0x20] sm:$0xff pattern:$0x75316420]
        %v834 = vld.sshfl [vmem:[#allocation1 + $0x28] sm:$0xff pattern:$0x75316420]
        %841 = vmatpush.bf16.msra.mxu0 %v736
        %842 = vmatpush.bf16.msra.mxu0 %v734
        %843 = vmatpush.bf16.msra.mxu0 %v732
        %844 = vmatpush.bf16.msra.mxu0 %v730
        %845 = vmatpush.bf16.msra.mxu0 %v728
        %846 = vmatpush.bf16.msra.mxu0 %v726
        %847 = vmatpush.bf16.msra.mxu0 %v724
        %848 = vmatpush.bf16.msra.mxu0 %v722
        %849 = vmatmul.bf16.gmra.mxu0 %v566
        %v850 = vpop.f32.mrf.mxu0
        %v851 = vadd.f32 %v829, %v850
        %v852 = vpop.f32.mrf.mxu0
        %v853 = vadd.f32 %v831, %v852
        %854 = vmatmul.bf16.gmra.mxu0 %v569
        %v855 = vpop.f32.mrf.mxu0
        %v856 = vadd.f32 %v833, %v855
        %v857 = vpop.f32.mrf.mxu0
        %858 = vdwg.mxu0
        %859 = vmatpush.bf16.msra.mxu0 %v752
        %860 = vmatpush.bf16.msra.mxu0 %v750
        %861 = vmatpush.bf16.msra.mxu0 %v748
        %862 = vmatpush.bf16.msra.mxu0 %v746
        %863 = vmatpush.bf16.msra.mxu0 %v744
        %864 = vmatpush.bf16.msra.mxu0 %v742
        %865 = vmatpush.bf16.msra.mxu0 %v740
        %866 = vmatpush.bf16.msra.mxu0 %v738
        %867 = vmatmul.bf16.gmra.mxu0 %v567
        %v868 = vpop.f32.mrf.mxu0
        %v869 = vadd.f32 %v851, %v868
        %v870 = vpop.f32.mrf.mxu0
        %v871 = vadd.f32 %v853, %v870
        %872 = vmatmul.bf16.gmra.mxu0 %v570
        %v873 = vpop.f32.mrf.mxu0
        %v874 = vadd.f32 %v856, %v873
        %v875 = vpop.f32.mrf.mxu0
        %876 = vdwg.mxu0
        %877 = vmatpush.bf16.msra.mxu0 %v768
        %878 = vmatpush.bf16.msra.mxu0 %v766
        %879 = vmatpush.bf16.msra.mxu0 %v764
        %880 = vmatpush.bf16.msra.mxu0 %v762
        %881 = vmatpush.bf16.msra.mxu0 %v760
        %882 = vmatpush.bf16.msra.mxu0 %v758
        %883 = vmatpush.bf16.msra.mxu0 %v756
        %884 = vmatpush.bf16.msra.mxu0 %v754
        %885 = vmatmul.bf16.gmra.mxu0 %v568
        %v886 = vpop.f32.mrf.mxu0
        %v887 = vadd.f32 %v869, %v886
        %v888 = vpop.f32.mrf.mxu0
        %v889 = vadd.f32 %v871, %v888
        %890 = vmatmul.bf16.gmra.mxu0 %v571
        %v891 = vpop.f32.mrf.mxu0
        %v892 = vadd.f32 %v874, %v891
        %v893 = vpop.f32.mrf.mxu0
        %894 = vdwg.mxu0
        %895 = vmatpush.bf16.msra.mxu0 %v737
        %896 = vmatpush.bf16.msra.mxu0 %v735
        %897 = vmatpush.bf16.msra.mxu0 %v733
        %898 = vmatpush.bf16.msra.mxu0 %v731
        %899 = vmatpush.bf16.msra.mxu0 %v729
        %900 = vmatpush.bf16.msra.mxu0 %v727
        %901 = vmatpush.bf16.msra.mxu0 %v725
        %902 = vmatpush.bf16.msra.mxu0 %v723
        %903 = vmatmul.bf16.gmra.mxu0 %v566
        %v904 = vpop.f32.mrf.mxu0
        %v905 = vadd.f32 %v830, %v904
        %v906 = vpop.f32.mrf.mxu0
        %v907 = vadd.f32 %v832, %v906
        %908 = vmatmul.bf16.gmra.mxu0 %v569
        %v909 = vpop.f32.mrf.mxu0
        %v910 = vadd.f32 %v834, %v909
        %v911 = vpop.f32.mrf.mxu0
        %912 = vdwg.mxu0
        %913 = vmatpush.bf16.msra.mxu0 %v753
        %914 = vmatpush.bf16.msra.mxu0 %v751
        %915 = vmatpush.bf16.msra.mxu0 %v749
        %916 = vmatpush.bf16.msra.mxu0 %v747
        %917 = vmatpush.bf16.msra.mxu0 %v745
        %918 = vmatpush.bf16.msra.mxu0 %v743
        %919 = vmatpush.bf16.msra.mxu0 %v741
        %920 = vmatpush.bf16.msra.mxu0 %v739
        %921 = vmatmul.bf16.gmra.mxu0 %v567
        %v922 = vpop.f32.mrf.mxu0
        %v923 = vadd.f32 %v905, %v922
        %v924 = vpop.f32.mrf.mxu0
        %v925 = vadd.f32 %v907, %v924
        %926 = vmatmul.bf16.gmra.mxu0 %v570
        %v927 = vpop.f32.mrf.mxu0
        %v928 = vadd.f32 %v910, %v927
        %v929 = vpop.f32.mrf.mxu0
        %930 = vdwg.mxu0
        %931 = vmatpush.bf16.msra.mxu0 %v769
        %932 = vmatpush.bf16.msra.mxu0 %v767
        %933 = vmatpush.bf16.msra.mxu0 %v765
        %934 = vmatpush.bf16.msra.mxu0 %v763
        %935 = vmatpush.bf16.msra.mxu0 %v761
        %936 = vmatpush.bf16.msra.mxu0 %v759
        %937 = vmatpush.bf16.msra.mxu0 %v757
        %938 = vmatpush.bf16.msra.mxu0 %v755
        %939 = vmatmul.bf16.gmra.mxu0 %v568
        %v940 = vpop.f32.mrf.mxu0
        %v941 = vadd.f32 %v923, %v940
        %v942 = vpop.f32.mrf.mxu0
        %v943 = vadd.f32 %v925, %v942
        %944 = vmatmul.bf16.gmra.mxu0 %v571
        %v945 = vpop.f32.mrf.mxu0
        %v946 = vadd.f32 %v928, %v945
        %v947 = vpop.f32.mrf.mxu0
        %948 = vdwg.mxu0
        %v955 = vrot.slane %v941, 4
        %v956 = vrot.slane %v943, 4
        %v957 = vrot.slane %v946, 4
        %v958 = vsel %vm521, %v887, %v955
        %v959 = vsel %vm521, %v955, %v887
        %v960 = vrot.slane %v959, 4
        %v961 = vsel %vm521, %v889, %v956
        %v962 = vsel %vm521, %v956, %v889
        %v963 = vrot.slane %v962, 4
        %v964 = vsel %vm521, %v892, %v957
        %v965 = vsel %vm521, %v957, %v892
        %v966 = vrot.slane %v965, 4
        %v973 = vmax.f32 %v958, 0.0
        %v974 = vmax.f32 %v960, 0.0
        %v975 = vmax.f32 %v961, 0.0
        %v976 = vmax.f32 %v963, 0.0
        %v977 = vmax.f32 %v964, 0.0
        %v978 = vmax.f32 %v966, 0.0
        %985 = vst [vmem:[#allocation1] ss:$2 sm:$0xff] %v973
        %s986 = scalar_lea.vmem [#allocation1], 1
        %987 = vst [vmem:[%s986] ss:$2 sm:$0xff] %v974
        %s988 = scalar_lea.vmem [#allocation1], 16
        %989 = vst [vmem:[%s988] ss:$2 sm:$0xff] %v975
        %v990 = vld.sshfl [vmem:[#allocation1] sm:$0xff pattern:$0x75316420]
        %v991 = vld.sshfl [vmem:[#allocation1 + $0x8] sm:$0xff pattern:$0x75316420]
        %v992 = vld.sshfl [vmem:[#allocation1 + $0x10] sm:$0xff pattern:$0x75316420]
        %v993 = vld.sshfl [vmem:[#allocation1 + $0x18] sm:$0xff pattern:$0x75316420]
        %s994 = scalar_lea.vmem [#allocation1], 32
        %995 = vst [vmem:[%s994] ss:$2 sm:$0xff] %v976
        %s996 = scalar_lea.vmem [#allocation1], 33
        %997 = vst [vmem:[%s996] ss:$2 sm:$0xff] %v977
        %s998 = scalar_lea.vmem [#allocation1], 48
        %999 = vst [vmem:[%s998] ss:$2 sm:$0xff] %v978
        %v1000 = vld.sshfl [vmem:[#allocation1 + $0x20] sm:$0xff pattern:$0x75316420]
        %v1001 = vld.sshfl [vmem:[#allocation1 + $0x28] sm:$0xff pattern:$0x75316420]
        %v1002 = vld.sshfl [vmem:[#allocation1 + $0x30] sm:$0xff pattern:$0x75316420]
        %v1003 = vld.sshfl [vmem:[#allocation1 + $0x38] sm:$0xff pattern:$0x75316420]
        %v1012 = vpack.c.bf16 %v991, %v990
        %v1013 = vpack.c.bf16 %v993, %v992
        %v1014 = vpack.c.bf16 %v1001, %v1000
        %v1015 = vpack.c.bf16 %v1003, %v1002
        %v1016 = vsel %vm434, 1, 0
        %v1017 = vsel %vm435, 1, 0
        %vm1018 = vcmp.eq.s32.totalorder %v1016, 1
        %vm1019 = vcmp.eq.s32.totalorder %v1017, 1
        %vm1020 = vmpackc.low %vm1018, %vm1018
        %vm1021 = vmpackc.low %vm1019, %vm1019
        %v1022 = vsel %vm1020, %v1012, 0
        %v1023 = vsel %vm1021, %v1013, 0
        %v1024 = vsel %vm1020, %v1014, 0
        %v1025 = vsel %vm1021, %v1015, 0
        %v1030 = vunpack.c.l.b16 %v1022
        %v1031 = vunpack.c.h.b16 %v1022
        %v1032 = vunpack.c.l.b16 %v1023
        %v1033 = vunpack.c.h.b16 %v1023
        %v1034 = vunpack.c.l.b16 %v1024
        %v1035 = vunpack.c.h.b16 %v1024
        %v1036 = vunpack.c.l.b16 %v1025
        %v1037 = vunpack.c.h.b16 %v1025
        %v1038 = vpack.c.b16 %v1032, %v1030
        %v1039 = vpack.c.b16 %v1033, %v1031
        %v1040 = vpack.c.b16 %v1036, %v1034
        %v1041 = vpack.c.b16 %v1037, %v1035
        %v1043 = vshrl.u32 %v1038, 16
        %v1045 = vshll.u32 %v1038, 16
        %v1047 = vrot.slane %v1045, 1
        %v1048 = vor.u32 %v1043, %v1047
        %v1050 = vshrl.u32 %v1039, 16
        %v1052 = vshll.u32 %v1039, 16
        %v1054 = vrot.slane %v1052, 1
        %v1055 = vor.u32 %v1050, %v1054
        %v1057 = vshrl.u32 %v1040, 16
        %v1059 = vshll.u32 %v1040, 16
        %v1061 = vrot.slane %v1059, 1
        %v1062 = vor.u32 %v1057, %v1061
        %v1064 = vshrl.u32 %v1041, 16
        %v1066 = vshll.u32 %v1041, 16
        %v1068 = vrot.slane %v1066, 1
        %v1069 = vor.u32 %v1064, %v1068
        %v1070 = vrot.slane %v1038, 1
        %v1071 = vrot.slane %v1039, 1
        %v1072 = vrot.slane %v1040, 1
        %v1073 = vrot.slane %v1041, 1
        %v1074 = vld [vmem:[#allocation4] sm:$0xff]
        %v1075 = vld [vmem:[#allocation4 + $0x8] sm:$0xff]
        %v1076 = vld [vmem:[#allocation4 + $0x10] sm:$0xff]
        %v1077 = vld [vmem:[#allocation4 + $0x18] sm:$0xff]
        %v1078 = vld [vmem:[#allocation4 + $0x20] sm:$0xff]
        %v1079 = vld [vmem:[#allocation4 + $0x28] sm:$0xff]
        %v1080 = vld [vmem:[#allocation4 + $0x30] sm:$0xff]
        %v1081 = vld [vmem:[#allocation4 + $0x38] sm:$0xff]
        %v1082 = vld [vmem:[#allocation4 + $0x40] sm:$0xff]
        %v1083 = vld [vmem:[#allocation4 + $0x48] sm:$0xff]
        %v1084 = vld [vmem:[#allocation4 + $0x50] sm:$0xff]
        %v1085 = vld [vmem:[#allocation4 + $0x58] sm:$0xff]
        %v1086 = vld [vmem:[#allocation4 + $0x60] sm:$0xff]
        %v1087 = vld [vmem:[#allocation4 + $0x68] sm:$0xff]
        %v1088 = vld [vmem:[#allocation4 + $0x70] sm:$0xff]
        %v1089 = vld [vmem:[#allocation4 + $0x78] sm:$0xff]
        %v1090 = vld [vmem:[#allocation4 + $0x80] sm:$0xff]
        %v1091 = vld [vmem:[#allocation4 + $0x88] sm:$0xff]
        %v1092 = vld [vmem:[#allocation4 + $0x90] sm:$0xff]
        %v1093 = vld [vmem:[#allocation4 + $0x98] sm:$0xff]
        %v1094 = vld [vmem:[#allocation4 + $0xa0] sm:$0xff]
        %v1095 = vld [vmem:[#allocation4 + $0xa8] sm:$0xff]
        %v1096 = vld [vmem:[#allocation4 + $0xb0] sm:$0xff]
        %v1097 = vld [vmem:[#allocation4 + $0xb8] sm:$0xff]
        %v1098 = vld [vmem:[#allocation4 + $0xc0] sm:$0xff]
        %v1099 = vld [vmem:[#allocation4 + $0xc8] sm:$0xff]
        %v1100 = vld [vmem:[#allocation4 + $0xd0] sm:$0xff]
        %v1101 = vld [vmem:[#allocation4 + $0xd8] sm:$0xff]
        %v1102 = vld [vmem:[#allocation4 + $0xe0] sm:$0xff]
        %v1103 = vld [vmem:[#allocation4 + $0xe8] sm:$0xff]
        %v1104 = vld [vmem:[#allocation4 + $0xf0] sm:$0xff]
        %v1105 = vld [vmem:[#allocation4 + $0xf8] sm:$0xff]
        %v1106 = vld [vmem:[#allocation4 + $0x100] sm:$0xff]
        %v1107 = vld [vmem:[#allocation4 + $0x108] sm:$0xff]
        %v1108 = vld [vmem:[#allocation4 + $0x110] sm:$0xff]
        %v1109 = vld [vmem:[#allocation4 + $0x118] sm:$0xff]
        %v1110 = vld [vmem:[#allocation4 + $0x120] sm:$0xff]
        %v1111 = vld [vmem:[#allocation4 + $0x128] sm:$0xff]
        %v1112 = vld [vmem:[#allocation4 + $0x130] sm:$0xff]
        %v1113 = vld [vmem:[#allocation4 + $0x138] sm:$0xff]
        %v1114 = vld [vmem:[#allocation4 + $0x140] sm:$0xff]
        %v1115 = vld [vmem:[#allocation4 + $0x148] sm:$0xff]
        %v1116 = vld [vmem:[#allocation4 + $0x150] sm:$0xff]
        %v1117 = vld [vmem:[#allocation4 + $0x158] sm:$0xff]
        %v1118 = vld [vmem:[#allocation4 + $0x160] sm:$0xff]
        %v1119 = vld [vmem:[#allocation4 + $0x168] sm:$0xff]
        %v1120 = vld [vmem:[#allocation4 + $0x170] sm:$0xff]
        %v1121 = vld [vmem:[#allocation4 + $0x178] sm:$0xff]
        %v1122 = vld [vmem:[#allocation4 + $0x180] sm:$0xff]
        %v1123 = vld [vmem:[#allocation4 + $0x188] sm:$0xff]
        %v1124 = vld [vmem:[#allocation4 + $0x190] sm:$0xff]
        %v1125 = vld [vmem:[#allocation4 + $0x198] sm:$0xff]
        %v1126 = vld [vmem:[#allocation4 + $0x1a0] sm:$0xff]
        %v1127 = vld [vmem:[#allocation4 + $0x1a8] sm:$0xff]
        %v1128 = vld [vmem:[#allocation4 + $0x1b0] sm:$0xff]
        %v1129 = vld [vmem:[#allocation4 + $0x1b8] sm:$0xff]
        %v1130 = vld [vmem:[#allocation4 + $0x1c0] sm:$0xff]
        %v1131 = vld [vmem:[#allocation4 + $0x1c8] sm:$0xff]
        %v1132 = vld [vmem:[#allocation4 + $0x1d0] sm:$0xff]
        %v1133 = vld [vmem:[#allocation4 + $0x1d8] sm:$0xff]
        %v1134 = vld [vmem:[#allocation4 + $0x1e0] sm:$0xff]
        %v1135 = vld [vmem:[#allocation4 + $0x1e8] sm:$0xff]
        %v1136 = vld [vmem:[#allocation4 + $0x1f0] sm:$0xff]
        %v1137 = vld [vmem:[#allocation4 + $0x1f8] sm:$0xff]
        %v1138 = vld [vmem:[#allocation4 + $0x200] sm:$0xff]
        %v1139 = vld [vmem:[#allocation4 + $0x208] sm:$0xff]
        %v1140 = vld [vmem:[#allocation4 + $0x210] sm:$0xff]
        %v1141 = vld [vmem:[#allocation4 + $0x218] sm:$0xff]
        %v1142 = vld [vmem:[#allocation4 + $0x220] sm:$0xff]
        %v1143 = vld [vmem:[#allocation4 + $0x228] sm:$0xff]
        %v1144 = vld [vmem:[#allocation4 + $0x230] sm:$0xff]
        %v1145 = vld [vmem:[#allocation4 + $0x238] sm:$0xff]
        %v1146 = vld [vmem:[#allocation4 + $0x240] sm:$0xff]
        %v1147 = vld [vmem:[#allocation4 + $0x248] sm:$0xff]
        %v1148 = vld [vmem:[#allocation4 + $0x250] sm:$0xff]
        %v1149 = vld [vmem:[#allocation4 + $0x258] sm:$0xff]
        %v1150 = vld [vmem:[#allocation4 + $0x260] sm:$0xff]
        %v1151 = vld [vmem:[#allocation4 + $0x268] sm:$0xff]
        %v1152 = vld [vmem:[#allocation4 + $0x270] sm:$0xff]
        %v1153 = vld [vmem:[#allocation4 + $0x278] sm:$0xff]
        %v1154 = vld [vmem:[#allocation4 + $0x280] sm:$0xff]
        %v1155 = vld [vmem:[#allocation4 + $0x288] sm:$0xff]
        %v1156 = vld [vmem:[#allocation4 + $0x290] sm:$0xff]
        %v1157 = vld [vmem:[#allocation4 + $0x298] sm:$0xff]
        %v1158 = vld [vmem:[#allocation4 + $0x2a0] sm:$0xff]
        %v1159 = vld [vmem:[#allocation4 + $0x2a8] sm:$0xff]
        %v1160 = vld [vmem:[#allocation4 + $0x2b0] sm:$0xff]
        %v1161 = vld [vmem:[#allocation4 + $0x2b8] sm:$0xff]
        %v1162 = vld [vmem:[#allocation4 + $0x2c0] sm:$0xff]
        %v1163 = vld [vmem:[#allocation4 + $0x2c8] sm:$0xff]
        %v1164 = vld [vmem:[#allocation4 + $0x2d0] sm:$0xff]
        %v1165 = vld [vmem:[#allocation4 + $0x2d8] sm:$0xff]
        %v1166 = vld [vmem:[#allocation4 + $0x2e0] sm:$0xff]
        %v1167 = vld [vmem:[#allocation4 + $0x2e8] sm:$0xff]
        %v1168 = vld [vmem:[#allocation4 + $0x2f0] sm:$0xff]
        %v1169 = vld [vmem:[#allocation4 + $0x2f8] sm:$0xff]
        %v1170 = vld [vmem:[%s4] sm:$0x3]
        %v1172 = vperm.slane %v1170, 0
        %v1173 = vperm.slane %v1170, 1
        %v1174 = vrot.slane %v1039, 7
        %v1175 = vrot.slane %v1048, 6
        %v1176 = vrot.slane %v1055, 5
        %v1177 = vrot.slane %v1070, 4
        %v1178 = vrot.slane %v1071, 3
        %v1179 = vrot.slane %v1041, 7
        %v1180 = vrot.slane %v1062, 6
        %v1181 = vrot.slane %v1069, 5
        %v1182 = vrot.slane %v1072, 4
        %v1183 = vrot.slane %v1073, 3
        %vm1184 = vcmask 1040384
        %v1186 = vsel %vm1184, %v1038, %v1174
        %v1188 = vsel %vm518, %v1186, %v1175
        %vm1189 = vcmask 1043459
        %v1192 = vsel %vm1189, %v1176, %v1177
        %vm1193 = vcmask 1044483
        %v1195 = vsel %vm1193, %v1192, %v1178
        %vm1196 = vcmask 1042432
        %v1197 = vsel %vm1196, %v1188, %v1195
        %vm1198 = vcmask 1041409
        %v1199 = vsel %vm1198, %v1038, %v1174
        %vm1200 = vcmask 1042433
        %v1201 = vsel %vm1200, %v1199, %v1175
        %vm1202 = vcmask 1044484
        %v1203 = vsel %vm1202, %v1176, %v1177
        %v1204 = vsel %vm530, %v1203, %v1178
        %vm1205 = vcmask 1043457
        %v1206 = vsel %vm1205, %v1201, %v1204
        %v1208 = vrot.slane %v1206, 1
        %vm1209 = vcmask 1042434
        %v1210 = vsel %vm1209, %v1038, %v1174
        %v1211 = vsel %vm524, %v1210, %v1175
        %vm1212 = vcmask 1045509
        %v1213 = vsel %vm1212, %v1176, %v1177
        %vm1214 = vcmask 1046533
        %v1215 = vsel %vm1214, %v1213, %v1178
        %vm1216 = vcmask 1044482
        %v1217 = vsel %vm1216, %v1211, %v1215
        %v1219 = vrot.slane %v1217, 2
        %v1220 = vsel %vm1189, %v1038, %v1174
        %v1221 = vsel %vm1193, %v1220, %v1175
        %vm1222 = vcmask 1046534
        %v1223 = vsel %vm1222, %v1176, %v1177
        %vm1224 = vcmask 1045504
        %v1225 = vsel %vm1224, %v1178, %v1223
        %vm1226 = vcmask 1045507
        %v1227 = vsel %vm1226, %v1221, %v1225
        %v1229 = vrot.slane %v1227, 3
        %v1230 = vsel %vm1202, %v1038, %v1174
        %v1231 = vsel %vm530, %v1230, %v1175
        %vm1232 = vcmask 1046528
        %v1233 = vsel %vm1232, %v1177, %v1176
        %vm1234 = vcmask 1046529
        %v1235 = vsel %vm1234, %v1178, %v1233
        %vm1236 = vcmask 1046532
        %v1237 = vsel %vm1236, %v1231, %v1235
        %v1239 = vrot.slane %v1237, 4
        %v1241 = vsel %vm1184, %v1040, %v1179
        %v1243 = vsel %vm518, %v1241, %v1180
        %v1246 = vsel %vm1189, %v1181, %v1182
        %v1248 = vsel %vm1193, %v1246, %v1183
        %v1249 = vsel %vm1196, %v1243, %v1248
        %v1250 = vsel %vm1198, %v1040, %v1179
        %v1251 = vsel %vm1200, %v1250, %v1180
        %v1252 = vsel %vm1202, %v1181, %v1182
        %v1253 = vsel %vm530, %v1252, %v1183
        %v1254 = vsel %vm1205, %v1251, %v1253
        %v1256 = vrot.slane %v1254, 1
        %v1257 = vsel %vm1209, %v1040, %v1179
        %v1258 = vsel %vm524, %v1257, %v1180
        %v1259 = vsel %vm1212, %v1181, %v1182
        %v1260 = vsel %vm1214, %v1259, %v1183
        %v1261 = vsel %vm1216, %v1258, %v1260
        %v1263 = vrot.slane %v1261, 2
        %v1264 = vsel %vm1189, %v1040, %v1179
        %v1265 = vsel %vm1193, %v1264, %v1180
        %v1266 = vsel %vm1222, %v1181, %v1182
        %v1267 = vsel %vm1224, %v1183, %v1266
        %v1268 = vsel %vm1226, %v1265, %v1267
        %v1270 = vrot.slane %v1268, 3
        %v1271 = vsel %vm1202, %v1040, %v1179
        %v1272 = vsel %vm530, %v1271, %v1180
        %v1273 = vsel %vm1232, %v1182, %v1181
        %v1274 = vsel %vm1234, %v1183, %v1273
        %v1275 = vsel %vm1236, %v1272, %v1274
        %v1277 = vrot.slane %v1275, 4
        %v1278 = vrot.slane %v1173, 6
        %v1279 = vsel %vm518, %v1172, %v1278
        %v1280 = vsel %vm524, %v1172, %v1278
        %v1281 = vrot.slane %v1280, 2
        %v1282 = vsel %vm530, %v1172, %v1278
        %v1283 = vrot.slane %v1282, 4
        %v1284 = vsel %vm1224, %v1278, %v1172
        %v1285 = vrot.slane %v1284, 6
        %1286 = vst [vmem:[#allocation1] ss:$9 sm:$0xff] %v1197
        %s1288 = scalar_lea.vmem [#allocation1], 1
        %1289 = vst [vmem:[%s1288] ss:$9 sm:$0xff] %v1208
        %s1291 = scalar_lea.vmem [#allocation1], 2
        %1292 = vst [vmem:[%s1291] ss:$9 sm:$0xff] %v1219
        %s1294 = scalar_lea.vmem [#allocation1], 3
        %1295 = vst [vmem:[%s1294] ss:$9 sm:$0xff] %v1229
        %s1297 = scalar_lea.vmem [#allocation1], 4
        %1298 = vst [vmem:[%s1297] ss:$9 sm:$0xff] %v1239
        %s1299 = scalar_lea.vmem [#allocation1], 5
        %1300 = vst [vmem:[%s1299] ss:$9 sm:$0xff] %v1249
        %s1302 = scalar_lea.vmem [#allocation1], 6
        %1303 = vst [vmem:[%s1302] ss:$9 sm:$0xff] %v1256
        %s1305 = scalar_lea.vmem [#allocation1], 7
        %1306 = vst [vmem:[%s1305] ss:$9 sm:$0xff] %v1263
        %v1307 = vld [vmem:[#allocation1] sm:$0xff]
        %v1308 = vld [vmem:[#allocation1 + $0x9] sm:$0xff]
        %v1309 = vld [vmem:[#allocation1 + $0x12] sm:$0xff]
        %v1310 = vld [vmem:[#allocation1 + $0x1b] sm:$0xff]
        %v1311 = vld [vmem:[#allocation1 + $0x24] sm:$0xff]
        %v1312 = vld [vmem:[#allocation1 + $0x2d] sm:$0xff]
        %1314 = vst [vmem:[#allocation1] ss:$9 sm:$0xff] %v1270
        %1316 = vst [vmem:[%s1288] ss:$9 sm:$0xff] %v1277
        %v1317 = vld [vmem:[#allocation1] sm:$0xff]
        %v1318 = vld [vmem:[#allocation1 + $0x9] sm:$0xff]
        %v1319 = vld [vmem:[#allocation1 + $0x12] sm:$0xff]
        %v1320 = vld [vmem:[#allocation1 + $0x1b] sm:$0xff]
        %v1321 = vld [vmem:[#allocation1 + $0x24] sm:$0xff]
        %v1322 = vld [vmem:[#allocation1 + $0x2d] sm:$0xff]
        %v1431 = vunpack.c.l.b16 %v1074
        %v1432 = vunpack.c.h.b16 %v1074
        %v1433 = vunpack.c.l.b16 %v1075
        %v1434 = vunpack.c.h.b16 %v1075
        %v1435 = vunpack.c.l.b16 %v1076
        %v1436 = vunpack.c.h.b16 %v1076
        %v1437 = vunpack.c.l.b16 %v1077
        %v1438 = vunpack.c.h.b16 %v1077
        %v1439 = vunpack.c.l.b16 %v1078
        %v1440 = vunpack.c.h.b16 %v1078
        %v1441 = vunpack.c.l.b16 %v1079
        %v1442 = vunpack.c.h.b16 %v1079
        %v1443 = vunpack.c.l.b16 %v1080
        %v1444 = vunpack.c.h.b16 %v1080
        %v1445 = vunpack.c.l.b16 %v1081
        %v1446 = vunpack.c.h.b16 %v1081
        %v1447 = vunpack.c.l.b16 %v1082
        %v1448 = vunpack.c.h.b16 %v1082
        %v1449 = vunpack.c.l.b16 %v1083
        %v1450 = vunpack.c.h.b16 %v1083
        %v1451 = vunpack.c.l.b16 %v1084
        %v1452 = vunpack.c.h.b16 %v1084
        %v1453 = vunpack.c.l.b16 %v1085
        %v1454 = vunpack.c.h.b16 %v1085
        %v1455 = vunpack.c.l.b16 %v1086
        %v1456 = vunpack.c.h.b16 %v1086
        %v1457 = vunpack.c.l.b16 %v1087
        %v1458 = vunpack.c.h.b16 %v1087
        %v1459 = vunpack.c.l.b16 %v1088
        %v1460 = vunpack.c.h.b16 %v1088
        %v1461 = vunpack.c.l.b16 %v1089
        %v1462 = vunpack.c.h.b16 %v1089
        %v1463 = vunpack.c.l.b16 %v1090
        %v1464 = vunpack.c.h.b16 %v1090
        %v1465 = vunpack.c.l.b16 %v1091
        %v1466 = vunpack.c.h.b16 %v1091
        %v1467 = vunpack.c.l.b16 %v1092
        %v1468 = vunpack.c.h.b16 %v1092
        %v1469 = vunpack.c.l.b16 %v1093
        %v1470 = vunpack.c.h.b16 %v1093
        %v1471 = vunpack.c.l.b16 %v1094
        %v1472 = vunpack.c.h.b16 %v1094
        %v1473 = vunpack.c.l.b16 %v1095
        %v1474 = vunpack.c.h.b16 %v1095
        %v1475 = vunpack.c.l.b16 %v1096
        %v1476 = vunpack.c.h.b16 %v1096
        %v1477 = vunpack.c.l.b16 %v1097
        %v1478 = vunpack.c.h.b16 %v1097
        %v1479 = vunpack.c.l.b16 %v1098
        %v1480 = vunpack.c.h.b16 %v1098
        %v1481 = vunpack.c.l.b16 %v1099
        %v1482 = vunpack.c.h.b16 %v1099
        %v1483 = vunpack.c.l.b16 %v1100
        %v1484 = vunpack.c.h.b16 %v1100
        %v1485 = vunpack.c.l.b16 %v1101
        %v1486 = vunpack.c.h.b16 %v1101
        %v1487 = vunpack.c.l.b16 %v1102
        %v1488 = vunpack.c.h.b16 %v1102
        %v1489 = vunpack.c.l.b16 %v1103
        %v1490 = vunpack.c.h.b16 %v1103
        %v1491 = vunpack.c.l.b16 %v1104
        %v1492 = vunpack.c.h.b16 %v1104
        %v1493 = vunpack.c.l.b16 %v1105
        %v1494 = vunpack.c.h.b16 %v1105
        %v1495 = vunpack.c.l.b16 %v1106
        %v1496 = vunpack.c.h.b16 %v1106
        %v1497 = vunpack.c.l.b16 %v1107
        %v1498 = vunpack.c.h.b16 %v1107
        %v1499 = vunpack.c.l.b16 %v1108
        %v1500 = vunpack.c.h.b16 %v1108
        %v1501 = vunpack.c.l.b16 %v1109
        %v1502 = vunpack.c.h.b16 %v1109
        %v1503 = vunpack.c.l.b16 %v1110
        %v1504 = vunpack.c.h.b16 %v1110
        %v1505 = vunpack.c.l.b16 %v1111
        %v1506 = vunpack.c.h.b16 %v1111
        %v1507 = vunpack.c.l.b16 %v1112
        %v1508 = vunpack.c.h.b16 %v1112
        %v1509 = vunpack.c.l.b16 %v1113
        %v1510 = vunpack.c.h.b16 %v1113
        %v1511 = vunpack.c.l.b16 %v1114
        %v1512 = vunpack.c.h.b16 %v1114
        %v1513 = vunpack.c.l.b16 %v1115
        %v1514 = vunpack.c.h.b16 %v1115
        %v1515 = vunpack.c.l.b16 %v1116
        %v1516 = vunpack.c.h.b16 %v1116
        %v1517 = vunpack.c.l.b16 %v1117
        %v1518 = vunpack.c.h.b16 %v1117
        %v1519 = vunpack.c.l.b16 %v1118
        %v1520 = vunpack.c.h.b16 %v1118
        %v1521 = vunpack.c.l.b16 %v1119
        %v1522 = vunpack.c.h.b16 %v1119
        %v1523 = vunpack.c.l.b16 %v1120
        %v1524 = vunpack.c.h.b16 %v1120
        %v1525 = vunpack.c.l.b16 %v1121
        %v1526 = vunpack.c.h.b16 %v1121
        %v1527 = vunpack.c.l.b16 %v1122
        %v1528 = vunpack.c.h.b16 %v1122
        %v1529 = vunpack.c.l.b16 %v1123
        %v1530 = vunpack.c.h.b16 %v1123
        %v1531 = vunpack.c.l.b16 %v1124
        %v1532 = vunpack.c.h.b16 %v1124
        %v1533 = vunpack.c.l.b16 %v1125
        %v1534 = vunpack.c.h.b16 %v1125
        %v1535 = vunpack.c.l.b16 %v1126
        %v1536 = vunpack.c.h.b16 %v1126
        %v1537 = vunpack.c.l.b16 %v1127
        %v1538 = vunpack.c.h.b16 %v1127
        %v1539 = vunpack.c.l.b16 %v1128
        %v1540 = vunpack.c.h.b16 %v1128
        %v1541 = vunpack.c.l.b16 %v1129
        %v1542 = vunpack.c.h.b16 %v1129
        %v1543 = vunpack.c.l.b16 %v1130
        %v1544 = vunpack.c.h.b16 %v1130
        %v1545 = vunpack.c.l.b16 %v1131
        %v1546 = vunpack.c.h.b16 %v1131
        %v1547 = vunpack.c.l.b16 %v1132
        %v1548 = vunpack.c.h.b16 %v1132
        %v1549 = vunpack.c.l.b16 %v1133
        %v1550 = vunpack.c.h.b16 %v1133
        %v1551 = vunpack.c.l.b16 %v1134
        %v1552 = vunpack.c.h.b16 %v1134
        %v1553 = vunpack.c.l.b16 %v1135
        %v1554 = vunpack.c.h.b16 %v1135
        %v1555 = vunpack.c.l.b16 %v1136
        %v1556 = vunpack.c.h.b16 %v1136
        %v1557 = vunpack.c.l.b16 %v1137
        %v1558 = vunpack.c.h.b16 %v1137
        %v1559 = vunpack.c.l.b16 %v1138
        %v1560 = vunpack.c.h.b16 %v1138
        %v1561 = vunpack.c.l.b16 %v1139
        %v1562 = vunpack.c.h.b16 %v1139
        %v1563 = vunpack.c.l.b16 %v1140
        %v1564 = vunpack.c.h.b16 %v1140
        %v1565 = vunpack.c.l.b16 %v1141
        %v1566 = vunpack.c.h.b16 %v1141
        %v1567 = vunpack.c.l.b16 %v1142
        %v1568 = vunpack.c.h.b16 %v1142
        %v1569 = vunpack.c.l.b16 %v1143
        %v1570 = vunpack.c.h.b16 %v1143
        %v1571 = vunpack.c.l.b16 %v1144
        %v1572 = vunpack.c.h.b16 %v1144
        %v1573 = vunpack.c.l.b16 %v1145
        %v1574 = vunpack.c.h.b16 %v1145
        %v1575 = vunpack.c.l.b16 %v1146
        %v1576 = vunpack.c.h.b16 %v1146
        %v1577 = vunpack.c.l.b16 %v1147
        %v1578 = vunpack.c.h.b16 %v1147
        %v1579 = vunpack.c.l.b16 %v1148
        %v1580 = vunpack.c.h.b16 %v1148
        %v1581 = vunpack.c.l.b16 %v1149
        %v1582 = vunpack.c.h.b16 %v1149
        %v1583 = vunpack.c.l.b16 %v1150
        %v1584 = vunpack.c.h.b16 %v1150
        %v1585 = vunpack.c.l.b16 %v1151
        %v1586 = vunpack.c.h.b16 %v1151
        %v1587 = vunpack.c.l.b16 %v1152
        %v1588 = vunpack.c.h.b16 %v1152
        %v1589 = vunpack.c.l.b16 %v1153
        %v1590 = vunpack.c.h.b16 %v1153
        %v1591 = vunpack.c.l.b16 %v1154
        %v1592 = vunpack.c.h.b16 %v1154
        %v1593 = vunpack.c.l.b16 %v1155
        %v1594 = vunpack.c.h.b16 %v1155
        %v1595 = vunpack.c.l.b16 %v1156
        %v1596 = vunpack.c.h.b16 %v1156
        %v1597 = vunpack.c.l.b16 %v1157
        %v1598 = vunpack.c.h.b16 %v1157
        %v1599 = vunpack.c.l.b16 %v1158
        %v1600 = vunpack.c.h.b16 %v1158
        %v1601 = vunpack.c.l.b16 %v1159
        %v1602 = vunpack.c.h.b16 %v1159
        %v1603 = vunpack.c.l.b16 %v1160
        %v1604 = vunpack.c.h.b16 %v1160
        %v1605 = vunpack.c.l.b16 %v1161
        %v1606 = vunpack.c.h.b16 %v1161
        %v1607 = vunpack.c.l.b16 %v1162
        %v1608 = vunpack.c.h.b16 %v1162
        %v1609 = vunpack.c.l.b16 %v1163
        %v1610 = vunpack.c.h.b16 %v1163
        %v1611 = vunpack.c.l.b16 %v1164
        %v1612 = vunpack.c.h.b16 %v1164
        %v1613 = vunpack.c.l.b16 %v1165
        %v1614 = vunpack.c.h.b16 %v1165
        %v1615 = vunpack.c.l.b16 %v1166
        %v1616 = vunpack.c.h.b16 %v1166
        %v1617 = vunpack.c.l.b16 %v1167
        %v1618 = vunpack.c.h.b16 %v1167
        %v1619 = vunpack.c.l.b16 %v1168
        %v1620 = vunpack.c.h.b16 %v1168
        %v1621 = vunpack.c.l.b16 %v1169
        %v1622 = vunpack.c.h.b16 %v1169
        %v1623 = vpack.c.b16 %v1433, %v1431
        %v1624 = vpack.c.b16 %v1434, %v1432
        %v1625 = vpack.c.b16 %v1437, %v1435
        %v1626 = vpack.c.b16 %v1438, %v1436
        %v1627 = vpack.c.b16 %v1441, %v1439
        %v1628 = vpack.c.b16 %v1442, %v1440
        %v1629 = vpack.c.b16 %v1445, %v1443
        %v1630 = vpack.c.b16 %v1446, %v1444
        %v1631 = vpack.c.b16 %v1449, %v1447
        %v1632 = vpack.c.b16 %v1450, %v1448
        %v1633 = vpack.c.b16 %v1453, %v1451
        %v1634 = vpack.c.b16 %v1454, %v1452
        %v1635 = vpack.c.b16 %v1457, %v1455
        %v1636 = vpack.c.b16 %v1458, %v1456
        %v1637 = vpack.c.b16 %v1461, %v1459
        %v1638 = vpack.c.b16 %v1462, %v1460
        %v1639 = vpack.c.b16 %v1465, %v1463
        %v1640 = vpack.c.b16 %v1466, %v1464
        %v1641 = vpack.c.b16 %v1469, %v1467
        %v1642 = vpack.c.b16 %v1470, %v1468
        %v1643 = vpack.c.b16 %v1473, %v1471
        %v1644 = vpack.c.b16 %v1474, %v1472
        %v1645 = vpack.c.b16 %v1477, %v1475
        %v1646 = vpack.c.b16 %v1478, %v1476
        %v1647 = vpack.c.b16 %v1481, %v1479
        %v1648 = vpack.c.b16 %v1482, %v1480
        %v1649 = vpack.c.b16 %v1485, %v1483
        %v1650 = vpack.c.b16 %v1486, %v1484
        %v1651 = vpack.c.b16 %v1489, %v1487
        %v1652 = vpack.c.b16 %v1490, %v1488
        %v1653 = vpack.c.b16 %v1493, %v1491
        %v1654 = vpack.c.b16 %v1494, %v1492
        %v1655 = vpack.c.b16 %v1497, %v1495
        %v1656 = vpack.c.b16 %v1498, %v1496
        %v1657 = vpack.c.b16 %v1501, %v1499
        %v1658 = vpack.c.b16 %v1502, %v1500
        %v1659 = vpack.c.b16 %v1505, %v1503
        %v1660 = vpack.c.b16 %v1506, %v1504
        %v1661 = vpack.c.b16 %v1509, %v1507
        %v1662 = vpack.c.b16 %v1510, %v1508
        %v1663 = vpack.c.b16 %v1513, %v1511
        %v1664 = vpack.c.b16 %v1514, %v1512
        %v1665 = vpack.c.b16 %v1517, %v1515
        %v1666 = vpack.c.b16 %v1518, %v1516
        %v1667 = vpack.c.b16 %v1521, %v1519
        %v1668 = vpack.c.b16 %v1522, %v1520
        %v1669 = vpack.c.b16 %v1525, %v1523
        %v1670 = vpack.c.b16 %v1526, %v1524
        %v1671 = vpack.c.b16 %v1529, %v1527
        %v1672 = vpack.c.b16 %v1530, %v1528
        %v1673 = vpack.c.b16 %v1533, %v1531
        %v1674 = vpack.c.b16 %v1534, %v1532
        %v1675 = vpack.c.b16 %v1537, %v1535
        %v1676 = vpack.c.b16 %v1538, %v1536
        %v1677 = vpack.c.b16 %v1541, %v1539
        %v1678 = vpack.c.b16 %v1542, %v1540
        %v1679 = vpack.c.b16 %v1545, %v1543
        %v1680 = vpack.c.b16 %v1546, %v1544
        %v1681 = vpack.c.b16 %v1549, %v1547
        %v1682 = vpack.c.b16 %v1550, %v1548
        %v1683 = vpack.c.b16 %v1553, %v1551
        %v1684 = vpack.c.b16 %v1554, %v1552
        %v1685 = vpack.c.b16 %v1557, %v1555
        %v1686 = vpack.c.b16 %v1558, %v1556
        %v1687 = vpack.c.b16 %v1561, %v1559
        %v1688 = vpack.c.b16 %v1562, %v1560
        %v1689 = vpack.c.b16 %v1565, %v1563
        %v1690 = vpack.c.b16 %v1566, %v1564
        %v1691 = vpack.c.b16 %v1569, %v1567
        %v1692 = vpack.c.b16 %v1570, %v1568
        %v1693 = vpack.c.b16 %v1573, %v1571
        %v1694 = vpack.c.b16 %v1574, %v1572
        %v1695 = vpack.c.b16 %v1577, %v1575
        %v1696 = vpack.c.b16 %v1578, %v1576
        %v1697 = vpack.c.b16 %v1581, %v1579
        %v1698 = vpack.c.b16 %v1582, %v1580
        %v1699 = vpack.c.b16 %v1585, %v1583
        %v1700 = vpack.c.b16 %v1586, %v1584
        %v1701 = vpack.c.b16 %v1589, %v1587
        %v1702 = vpack.c.b16 %v1590, %v1588
        %v1703 = vpack.c.b16 %v1593, %v1591
        %v1704 = vpack.c.b16 %v1594, %v1592
        %v1705 = vpack.c.b16 %v1597, %v1595
        %v1706 = vpack.c.b16 %v1598, %v1596
        %v1707 = vpack.c.b16 %v1601, %v1599
        %v1708 = vpack.c.b16 %v1602, %v1600
        %v1709 = vpack.c.b16 %v1605, %v1603
        %v1710 = vpack.c.b16 %v1606, %v1604
        %v1711 = vpack.c.b16 %v1609, %v1607
        %v1712 = vpack.c.b16 %v1610, %v1608
        %v1713 = vpack.c.b16 %v1613, %v1611
        %v1714 = vpack.c.b16 %v1614, %v1612
        %v1715 = vpack.c.b16 %v1617, %v1615
        %v1716 = vpack.c.b16 %v1618, %v1616
        %v1717 = vpack.c.b16 %v1621, %v1619
        %v1718 = vpack.c.b16 %v1622, %v1620
        %1815 = vst [vmem:[#allocation1] ss:$4 sm:$0xff] %v1279
        %s1816 = scalar_lea.vmem [#allocation1], 1
        %1817 = vst [vmem:[%s1816] ss:$4 sm:$0xff] %v1281
        %s1818 = scalar_lea.vmem [#allocation1], 2
        %1819 = vst [vmem:[%s1818] ss:$4 sm:$0xff] %v1283
        %s1820 = scalar_lea.vmem [#allocation1], 3
        %1821 = vst [vmem:[%s1820] ss:$4 sm:$0xff] %v1285
        %s1822 = scalar_lea.vmem [#allocation1], 32
        %1823 = vst [vmem:[%s1822] ss:$4 sm:$0xff] %v1279
        %s1824 = scalar_lea.vmem [#allocation1], 33
        %1825 = vst [vmem:[%s1824] ss:$4 sm:$0xff] %v1279
        %s1826 = scalar_lea.vmem [#allocation1], 34
        %1827 = vst [vmem:[%s1826] ss:$4 sm:$0xff] %v1281
        %s1828 = scalar_lea.vmem [#allocation1], 35
        %1829 = vst [vmem:[%s1828] ss:$4 sm:$0xff] %v1283
        %v1830 = vld.sshfl [vmem:[#allocation1] sm:$0xff pattern:$0x73625140]
        %v1831 = vld.sshfl [vmem:[#allocation1 + $0x8] sm:$0xff pattern:$0x73625140]
        %v1832 = vld.sshfl [vmem:[#allocation1 + $0x20] sm:$0xff pattern:$0x73625140]
        %v1833 = vld.sshfl [vmem:[#allocation1 + $0x28] sm:$0xff pattern:$0x73625140]
        %1834 = vst [vmem:[#allocation1] ss:$4 sm:$0xff] %v1285
        %1835 = vst [vmem:[%s1816] ss:$4 sm:$0xff] %v1279
        %v1836 = vld.sshfl [vmem:[#allocation1] sm:$0xff pattern:$0x73625140]
        %v1837 = vld.sshfl [vmem:[#allocation1 + $0x8] sm:$0xff pattern:$0x73625140]
        %1844 = vmatpush.bf16.msra.mxu0 %v1637
        %1845 = vmatpush.bf16.msra.mxu0 %v1635
        %1846 = vmatpush.bf16.msra.mxu0 %v1633
        %1847 = vmatpush.bf16.msra.mxu0 %v1631
        %1848 = vmatpush.bf16.msra.mxu0 %v1629
        %1849 = vmatpush.bf16.msra.mxu0 %v1627
        %1850 = vmatpush.bf16.msra.mxu0 %v1625
        %1851 = vmatpush.bf16.msra.mxu0 %v1623
        %1852 = vmatmul.bf16.gmra.mxu0 %v1307
        %v1853 = vpop.f32.mrf.mxu0
        %v1854 = vadd.f32 %v1830, %v1853
        %v1855 = vpop.f32.mrf.mxu0
        %v1856 = vadd.f32 %v1832, %v1855
        %1857 = vmatmul.bf16.gmra.mxu0 %v1317
        %v1858 = vpop.f32.mrf.mxu0
        %v1859 = vadd.f32 %v1836, %v1858
        %v1860 = vpop.f32.mrf.mxu0
        %1861 = vdwg.mxu0
        %1862 = vmatpush.bf16.msra.mxu0 %v1653
        %1863 = vmatpush.bf16.msra.mxu0 %v1651
        %1864 = vmatpush.bf16.msra.mxu0 %v1649
        %1865 = vmatpush.bf16.msra.mxu0 %v1647
        %1866 = vmatpush.bf16.msra.mxu0 %v1645
        %1867 = vmatpush.bf16.msra.mxu0 %v1643
        %1868 = vmatpush.bf16.msra.mxu0 %v1641
        %1869 = vmatpush.bf16.msra.mxu0 %v1639
        %1870 = vmatmul.bf16.gmra.mxu0 %v1308
        %v1871 = vpop.f32.mrf.mxu0
        %v1872 = vadd.f32 %v1854, %v1871
        %v1873 = vpop.f32.mrf.mxu0
        %v1874 = vadd.f32 %v1856, %v1873
        %1875 = vmatmul.bf16.gmra.mxu0 %v1318
        %v1876 = vpop.f32.mrf.mxu0
        %v1877 = vadd.f32 %v1859, %v1876
        %v1878 = vpop.f32.mrf.mxu0
        %1879 = vdwg.mxu0
        %1880 = vmatpush.bf16.msra.mxu0 %v1669
        %1881 = vmatpush.bf16.msra.mxu0 %v1667
        %1882 = vmatpush.bf16.msra.mxu0 %v1665
        %1883 = vmatpush.bf16.msra.mxu0 %v1663
        %1884 = vmatpush.bf16.msra.mxu0 %v1661
        %1885 = vmatpush.bf16.msra.mxu0 %v1659
        %1886 = vmatpush.bf16.msra.mxu0 %v1657
        %1887 = vmatpush.bf16.msra.mxu0 %v1655
        %1888 = vmatmul.bf16.gmra.mxu0 %v1309
        %v1889 = vpop.f32.mrf.mxu0
        %v1890 = vadd.f32 %v1872, %v1889
        %v1891 = vpop.f32.mrf.mxu0
        %v1892 = vadd.f32 %v1874, %v1891
        %1893 = vmatmul.bf16.gmra.mxu0 %v1319
        %v1894 = vpop.f32.mrf.mxu0
        %v1895 = vadd.f32 %v1877, %v1894
        %v1896 = vpop.f32.mrf.mxu0
        %1897 = vdwg.mxu0
        %1898 = vmatpush.bf16.msra.mxu0 %v1685
        %1899 = vmatpush.bf16.msra.mxu0 %v1683
        %1900 = vmatpush.bf16.msra.mxu0 %v1681
        %1901 = vmatpush.bf16.msra.mxu0 %v1679
        %1902 = vmatpush.bf16.msra.mxu0 %v1677
        %1903 = vmatpush.bf16.msra.mxu0 %v1675
        %1904 = vmatpush.bf16.msra.mxu0 %v1673
        %1905 = vmatpush.bf16.msra.mxu0 %v1671
        %1906 = vmatmul.bf16.gmra.mxu0 %v1310
        %v1907 = vpop.f32.mrf.mxu0
        %v1908 = vadd.f32 %v1890, %v1907
        %v1909 = vpop.f32.mrf.mxu0
        %v1910 = vadd.f32 %v1892, %v1909
        %1911 = vmatmul.bf16.gmra.mxu0 %v1320
        %v1912 = vpop.f32.mrf.mxu0
        %v1913 = vadd.f32 %v1895, %v1912
        %v1914 = vpop.f32.mrf.mxu0
        %1915 = vdwg.mxu0
        %1916 = vmatpush.bf16.msra.mxu0 %v1701
        %1917 = vmatpush.bf16.msra.mxu0 %v1699
        %1918 = vmatpush.bf16.msra.mxu0 %v1697
        %1919 = vmatpush.bf16.msra.mxu0 %v1695
        %1920 = vmatpush.bf16.msra.mxu0 %v1693
        %1921 = vmatpush.bf16.msra.mxu0 %v1691
        %1922 = vmatpush.bf16.msra.mxu0 %v1689
        %1923 = vmatpush.bf16.msra.mxu0 %v1687
        %1924 = vmatmul.bf16.gmra.mxu0 %v1311
        %v1925 = vpop.f32.mrf.mxu0
        %v1926 = vadd.f32 %v1908, %v1925
        %v1927 = vpop.f32.mrf.mxu0
        %v1928 = vadd.f32 %v1910, %v1927
        %1929 = vmatmul.bf16.gmra.mxu0 %v1321
        %v1930 = vpop.f32.mrf.mxu0
        %v1931 = vadd.f32 %v1913, %v1930
        %v1932 = vpop.f32.mrf.mxu0
        %1933 = vdwg.mxu0
        %1934 = vmatpush.bf16.msra.mxu0 %v1717
        %1935 = vmatpush.bf16.msra.mxu0 %v1715
        %1936 = vmatpush.bf16.msra.mxu0 %v1713
        %1937 = vmatpush.bf16.msra.mxu0 %v1711
        %1938 = vmatpush.bf16.msra.mxu0 %v1709
        %1939 = vmatpush.bf16.msra.mxu0 %v1707
        %1940 = vmatpush.bf16.msra.mxu0 %v1705
        %1941 = vmatpush.bf16.msra.mxu0 %v1703
        %1942 = vmatmul.bf16.gmra.mxu0 %v1312
        %v1943 = vpop.f32.mrf.mxu0
        %v1944 = vadd.f32 %v1926, %v1943
        %v1945 = vpop.f32.mrf.mxu0
        %v1946 = vadd.f32 %v1928, %v1945
        %1947 = vmatmul.bf16.gmra.mxu0 %v1322
        %v1948 = vpop.f32.mrf.mxu0
        %v1949 = vadd.f32 %v1931, %v1948
        %v1950 = vpop.f32.mrf.mxu0
        %1951 = vdwg.mxu0
        %1952 = vmatpush.bf16.msra.mxu0 %v1638
        %1953 = vmatpush.bf16.msra.mxu0 %v1636
        %1954 = vmatpush.bf16.msra.mxu0 %v1634
        %1955 = vmatpush.bf16.msra.mxu0 %v1632
        %1956 = vmatpush.bf16.msra.mxu0 %v1630
        %1957 = vmatpush.bf16.msra.mxu0 %v1628
        %1958 = vmatpush.bf16.msra.mxu0 %v1626
        %1959 = vmatpush.bf16.msra.mxu0 %v1624
        %1960 = vmatmul.bf16.gmra.mxu0 %v1307
        %v1961 = vpop.f32.mrf.mxu0
        %v1962 = vadd.f32 %v1831, %v1961
        %v1963 = vpop.f32.mrf.mxu0
        %v1964 = vadd.f32 %v1833, %v1963
        %1965 = vmatmul.bf16.gmra.mxu0 %v1317
        %v1966 = vpop.f32.mrf.mxu0
        %v1967 = vadd.f32 %v1837, %v1966
        %v1968 = vpop.f32.mrf.mxu0
        %1969 = vdwg.mxu0
        %1970 = vmatpush.bf16.msra.mxu0 %v1654
        %1971 = vmatpush.bf16.msra.mxu0 %v1652
        %1972 = vmatpush.bf16.msra.mxu0 %v1650
        %1973 = vmatpush.bf16.msra.mxu0 %v1648
        %1974 = vmatpush.bf16.msra.mxu0 %v1646
        %1975 = vmatpush.bf16.msra.mxu0 %v1644
        %1976 = vmatpush.bf16.msra.mxu0 %v1642
        %1977 = vmatpush.bf16.msra.mxu0 %v1640
        %1978 = vmatmul.bf16.gmra.mxu0 %v1308
        %v1979 = vpop.f32.mrf.mxu0
        %v1980 = vadd.f32 %v1962, %v1979
        %v1981 = vpop.f32.mrf.mxu0
        %v1982 = vadd.f32 %v1964, %v1981
        %1983 = vmatmul.bf16.gmra.mxu0 %v1318
        %v1984 = vpop.f32.mrf.mxu0
        %v1985 = vadd.f32 %v1967, %v1984
        %v1986 = vpop.f32.mrf.mxu0
        %1987 = vdwg.mxu0
        %1988 = vmatpush.bf16.msra.mxu0 %v1670
        %1989 = vmatpush.bf16.msra.mxu0 %v1668
        %1990 = vmatpush.bf16.msra.mxu0 %v1666
        %1991 = vmatpush.bf16.msra.mxu0 %v1664
        %1992 = vmatpush.bf16.msra.mxu0 %v1662
        %1993 = vmatpush.bf16.msra.mxu0 %v1660
        %1994 = vmatpush.bf16.msra.mxu0 %v1658
        %1995 = vmatpush.bf16.msra.mxu0 %v1656
        %1996 = vmatmul.bf16.gmra.mxu0 %v1309
        %v1997 = vpop.f32.mrf.mxu0
        %v1998 = vadd.f32 %v1980, %v1997
        %v1999 = vpop.f32.mrf.mxu0
        %v2000 = vadd.f32 %v1982, %v1999
        %2001 = vmatmul.bf16.gmra.mxu0 %v1319
        %v2002 = vpop.f32.mrf.mxu0
        %v2003 = vadd.f32 %v1985, %v2002
        %v2004 = vpop.f32.mrf.mxu0
        %2005 = vdwg.mxu0
        %2006 = vmatpush.bf16.msra.mxu0 %v1686
        %2007 = vmatpush.bf16.msra.mxu0 %v1684
        %2008 = vmatpush.bf16.msra.mxu0 %v1682
        %2009 = vmatpush.bf16.msra.mxu0 %v1680
        %2010 = vmatpush.bf16.msra.mxu0 %v1678
        %2011 = vmatpush.bf16.msra.mxu0 %v1676
        %2012 = vmatpush.bf16.msra.mxu0 %v1674
        %2013 = vmatpush.bf16.msra.mxu0 %v1672
        %2014 = vmatmul.bf16.gmra.mxu0 %v1310
        %v2015 = vpop.f32.mrf.mxu0
        %v2016 = vadd.f32 %v1998, %v2015
        %v2017 = vpop.f32.mrf.mxu0
        %v2018 = vadd.f32 %v2000, %v2017
        %2019 = vmatmul.bf16.gmra.mxu0 %v1320
        %v2020 = vpop.f32.mrf.mxu0
        %v2021 = vadd.f32 %v2003, %v2020
        %v2022 = vpop.f32.mrf.mxu0
        %2023 = vdwg.mxu0
        %2024 = vmatpush.bf16.msra.mxu0 %v1702
        %2025 = vmatpush.bf16.msra.mxu0 %v1700
        %2026 = vmatpush.bf16.msra.mxu0 %v1698
        %2027 = vmatpush.bf16.msra.mxu0 %v1696
        %2028 = vmatpush.bf16.msra.mxu0 %v1694
        %2029 = vmatpush.bf16.msra.mxu0 %v1692
        %2030 = vmatpush.bf16.msra.mxu0 %v1690
        %2031 = vmatpush.bf16.msra.mxu0 %v1688
        %2032 = vmatmul.bf16.gmra.mxu0 %v1311
        %v2033 = vpop.f32.mrf.mxu0
        %v2034 = vadd.f32 %v2016, %v2033
        %v2035 = vpop.f32.mrf.mxu0
        %v2036 = vadd.f32 %v2018, %v2035
        %2037 = vmatmul.bf16.gmra.mxu0 %v1321
        %v2038 = vpop.f32.mrf.mxu0
        %v2039 = vadd.f32 %v2021, %v2038
        %v2040 = vpop.f32.mrf.mxu0
        %2041 = vdwg.mxu0
        %2042 = vmatpush.bf16.msra.mxu0 %v1718
        %2043 = vmatpush.bf16.msra.mxu0 %v1716
        %2044 = vmatpush.bf16.msra.mxu0 %v1714
        %2045 = vmatpush.bf16.msra.mxu0 %v1712
        %2046 = vmatpush.bf16.msra.mxu0 %v1710
        %2047 = vmatpush.bf16.msra.mxu0 %v1708
        %2048 = vmatpush.bf16.msra.mxu0 %v1706
        %2049 = vmatpush.bf16.msra.mxu0 %v1704
        %2050 = vmatmul.bf16.gmra.mxu0 %v1312
        %v2051 = vpop.f32.mrf.mxu0
        %v2052 = vadd.f32 %v2034, %v2051
        %v2053 = vpop.f32.mrf.mxu0
        %v2054 = vadd.f32 %v2036, %v2053
        %2055 = vmatmul.bf16.gmra.mxu0 %v1322
        %v2056 = vpop.f32.mrf.mxu0
        %v2057 = vadd.f32 %v2039, %v2056
        %v2058 = vpop.f32.mrf.mxu0
        %2059 = vdwg.mxu0
        %v2066 = vrot.slane %v2052, 6
        %v2067 = vrot.slane %v2054, 6
        %v2068 = vrot.slane %v2057, 6
        %v2069 = vsel %vm518, %v1944, %v2066
        %v2070 = vsel %vm524, %v1944, %v2066
        %v2071 = vrot.slane %v2070, 2
        %v2072 = vsel %vm530, %v1944, %v2066
        %v2073 = vrot.slane %v2072, 4
        %v2074 = vsel %vm1224, %v2066, %v1944
        %v2075 = vrot.slane %v2074, 6
        %v2076 = vsel %vm518, %v1946, %v2067
        %v2077 = vsel %vm524, %v1946, %v2067
        %v2078 = vrot.slane %v2077, 2
        %v2079 = vsel %vm530, %v1946, %v2067
        %v2080 = vrot.slane %v2079, 4
        %v2081 = vsel %vm1224, %v2067, %v1946
        %v2082 = vrot.slane %v2081, 6
        %v2083 = vsel %vm518, %v1949, %v2068
        %v2084 = vsel %vm524, %v1949, %v2068
        %v2085 = vrot.slane %v2084, 2
        %v2096 = vmax.f32 %v2069, 0.0
        %v2097 = vmax.f32 %v2071, 0.0
        %v2098 = vmax.f32 %v2073, 0.0
        %v2099 = vmax.f32 %v2075, 0.0
        %v2100 = vmax.f32 %v2076, 0.0
        %v2101 = vmax.f32 %v2078, 0.0
        %v2102 = vmax.f32 %v2080, 0.0
        %v2103 = vmax.f32 %v2082, 0.0
        %v2104 = vmax.f32 %v2083, 0.0
        %v2105 = vmax.f32 %v2085, 0.0
        %2116 = vst [vmem:[#allocation1] ss:$4 sm:$0xff] %v2096
        %s2117 = scalar_lea.vmem [#allocation1], 1
        %2118 = vst [vmem:[%s2117] ss:$4 sm:$0xff] %v2097
        %s2119 = scalar_lea.vmem [#allocation1], 2
        %2120 = vst [vmem:[%s2119] ss:$4 sm:$0xff] %v2098
        %s2121 = scalar_lea.vmem [#allocation1], 3
        %2122 = vst [vmem:[%s2121] ss:$4 sm:$0xff] %v2099
        %s2123 = scalar_lea.vmem [#allocation1], 32
        %2124 = vst [vmem:[%s2123] ss:$4 sm:$0xff] %v2100
        %v2125 = vld.sshfl [vmem:[#allocation1] sm:$0xff pattern:$0x73625140]
        %v2126 = vld.sshfl [vmem:[#allocation1 + $0x8] sm:$0xff pattern:$0x73625140]
        %v2127 = vld.sshfl [vmem:[#allocation1 + $0x20] sm:$0xff pattern:$0x73625140]
        %v2128 = vld.sshfl [vmem:[#allocation1 + $0x28] sm:$0xff pattern:$0x73625140]
        %2129 = vst [vmem:[#allocation1] ss:$4 sm:$0xff] %v2101
        %2130 = vst [vmem:[%s2117] ss:$4 sm:$0xff] %v2102
        %2131 = vst [vmem:[%s2119] ss:$4 sm:$0xff] %v2103
        %2132 = vst [vmem:[%s2121] ss:$4 sm:$0xff] %v2104
        %2133 = vst [vmem:[%s2123] ss:$4 sm:$0xff] %v2105
        %v2134 = vld.sshfl [vmem:[#allocation1] sm:$0xff pattern:$0x73625140]
        %v2135 = vld.sshfl [vmem:[#allocation1 + $0x8] sm:$0xff pattern:$0x73625140]
        %v2136 = vld.sshfl [vmem:[#allocation1 + $0x20] sm:$0xff pattern:$0x73625140]
        %v2137 = vld.sshfl [vmem:[#allocation1 + $0x28] sm:$0xff pattern:$0x73625140]
        %v2146 = vpack.c.bf16 %v2126, %v2125
        %v2147 = vpack.c.bf16 %v2128, %v2127
        %v2148 = vpack.c.bf16 %v2135, %v2134
        %v2149 = vpack.c.bf16 %v2137, %v2136
        %v2150 = vsel %vm1020, 65537, 0
        %v2151 = vsel %vm1021, 65537, 0
        %vm2152 = vsmask.f32 3328
        %vm2153 = vsmask.f32 7440
        %vm2154 = vmor %vm2152, %vm2153
        %v2156 = vshrl.u32 %v2150, 16
        %v2158 = vrot.slane %v2156, 4
        %v2159 = vshll.u32 %v2150, 16
        %v2161 = vrot.slane %v2159, 5
        %v2162 = vor.u32 %v2158, %v2161
        %v2163 = vrot.slane %v2162, 4
        %v2165 = vshll.u32 %v2151, 16
        %v2167 = vrot.slane %v2165, 5
        %v2168 = vsel %vm2154, %v2163, %v2167
        %v2169 = vshrl.u32 %v2151, 16
        %v2171 = vrot.slane %v2169, 4
        %v2172 = vor.u32 %v2171, %v2167
        %v2173 = vrot.slane %v2172, 4
        %v2174 = vunpack.c.l.b16 %v2168
        %v2175 = vunpack.c.h.b16 %v2168
        %v2176 = vunpack.c.l.b16 0
        %v2177 = vunpack.c.h.b16 0
        %vm2178 = vcmp.ne.s32.totalorder %v2174, %v2176
        %vm2179 = vcmp.ne.s32.totalorder %v2175, %v2177
        %vm2180 = vmpackc.low %vm2179, %vm2178
        %v2181 = vunpack.c.l.b16 %v2173
        %v2182 = vunpack.c.h.b16 %v2173
        %v2183 = vunpack.c.l.b16 0
        %v2184 = vunpack.c.h.b16 0
        %vm2185 = vcmp.ne.s32.totalorder %v2181, %v2183
        %vm2186 = vcmp.ne.s32.totalorder %v2182, %v2184
        %vm2187 = vmpackc.low %vm2186, %vm2185
        %v2188 = vsel %vm2180, %v2146, 0
        %v2189 = vsel %vm2187, %v2147, 0
        %v2190 = vsel %vm2180, %v2148, 0
        %v2191 = vsel %vm2187, %v2149, 0
        %v2194 = vunpack.c.l.b16 %v2188
        %v2195 = vunpack.c.h.b16 %v2188
        %v2196 = vunpack.c.l.b16 %v2190
        %v2197 = vunpack.c.h.b16 %v2190
        %v2200 = vunpack.c.l.b16 %v2189
        %v2201 = vunpack.c.h.b16 %v2189
        %v2202 = vunpack.c.l.b16 %v2191
        %v2203 = vunpack.c.h.b16 %v2191
        %v2204 = vpack.c.b16 %v2200, %v2194
        %v2205 = vpack.c.b16 %v2201, %v2195
        %v2206 = vpack.c.b16 %v2202, %v2196
        %v2207 = vpack.c.b16 %v2203, %v2197
        %v2209 = vshrl.u32 %v2204, 16
        %v2211 = vshll.u32 %v2204, 16
        %v2213 = vrot.slane %v2211, 1
        %v2214 = vor.u32 %v2209, %v2213
        %v2216 = vshrl.u32 %v2205, 16
        %v2218 = vshll.u32 %v2205, 16
        %v2220 = vrot.slane %v2218, 1
        %v2221 = vor.u32 %v2216, %v2220
        %v2223 = vshrl.u32 %v2206, 16
        %v2225 = vshll.u32 %v2206, 16
        %v2227 = vrot.slane %v2225, 1
        %v2228 = vor.u32 %v2223, %v2227
        %v2230 = vshrl.u32 %v2207, 16
        %v2232 = vshll.u32 %v2207, 16
        %v2234 = vrot.slane %v2232, 1
        %v2235 = vor.u32 %v2230, %v2234
        %v2236 = vrot.slane %v2204, 1
        %v2237 = vrot.slane %v2205, 1
        %v2238 = vrot.slane %v2206, 1
        %v2239 = vrot.slane %v2207, 1
        %v2240 = vld [vmem:[#allocation6] sm:$0xff]
        %v2241 = vld [vmem:[#allocation6 + $0x8] sm:$0xff]
        %v2242 = vld [vmem:[#allocation6 + $0x10] sm:$0xff]
        %v2243 = vld [vmem:[#allocation6 + $0x18] sm:$0xff]
        %v2244 = vld [vmem:[#allocation6 + $0x20] sm:$0xff]
        %v2245 = vld [vmem:[#allocation6 + $0x28] sm:$0xff]
        %v2246 = vld [vmem:[#allocation6 + $0x30] sm:$0xff]
        %v2247 = vld [vmem:[#allocation6 + $0x38] sm:$0xff]
        %v2248 = vld [vmem:[#allocation6 + $0x40] sm:$0xff]
        %v2249 = vld [vmem:[#allocation6 + $0x48] sm:$0xff]
        %v2250 = vld [vmem:[#allocation6 + $0x50] sm:$0xff]
        %v2251 = vld [vmem:[#allocation6 + $0x58] sm:$0xff]
        %v2252 = vld [vmem:[#allocation6 + $0x60] sm:$0xff]
        %v2253 = vld [vmem:[#allocation6 + $0x68] sm:$0xff]
        %v2254 = vld [vmem:[#allocation6 + $0x70] sm:$0xff]
        %v2255 = vld [vmem:[#allocation6 + $0x78] sm:$0xff]
        %v2256 = vld [vmem:[#allocation6 + $0x80] sm:$0xff]
        %v2257 = vld [vmem:[#allocation6 + $0x88] sm:$0xff]
        %v2258 = vld [vmem:[#allocation6 + $0x90] sm:$0xff]
        %v2259 = vld [vmem:[#allocation6 + $0x98] sm:$0xff]
        %v2260 = vld [vmem:[#allocation6 + $0xa0] sm:$0xff]
        %v2261 = vld [vmem:[#allocation6 + $0xa8] sm:$0xff]
        %v2262 = vld [vmem:[#allocation6 + $0xb0] sm:$0xff]
        %v2263 = vld [vmem:[#allocation6 + $0xb8] sm:$0xff]
        %v2264 = vld [vmem:[#allocation6 + $0xc0] sm:$0xff]
        %v2265 = vld [vmem:[#allocation6 + $0xc8] sm:$0xff]
        %v2266 = vld [vmem:[#allocation6 + $0xd0] sm:$0xff]
        %v2267 = vld [vmem:[#allocation6 + $0xd8] sm:$0xff]
        %v2268 = vld [vmem:[#allocation6 + $0xe0] sm:$0xff]
        %v2269 = vld [vmem:[#allocation6 + $0xe8] sm:$0xff]
        %v2270 = vld [vmem:[#allocation6 + $0xf0] sm:$0xff]
        %v2271 = vld [vmem:[#allocation6 + $0xf8] sm:$0xff]
        %v2272 = vld [vmem:[#allocation6 + $0x100] sm:$0xff]
        %v2273 = vld [vmem:[#allocation6 + $0x108] sm:$0xff]
        %v2274 = vld [vmem:[#allocation6 + $0x110] sm:$0xff]
        %v2275 = vld [vmem:[#allocation6 + $0x118] sm:$0xff]
        %v2276 = vld [vmem:[#allocation6 + $0x120] sm:$0xff]
        %v2277 = vld [vmem:[#allocation6 + $0x128] sm:$0xff]
        %v2278 = vld [vmem:[#allocation6 + $0x130] sm:$0xff]
        %v2279 = vld [vmem:[#allocation6 + $0x138] sm:$0xff]
        %v2280 = vld [vmem:[#allocation6 + $0x140] sm:$0xff]
        %v2281 = vld [vmem:[#allocation6 + $0x148] sm:$0xff]
        %v2282 = vld [vmem:[#allocation6 + $0x150] sm:$0xff]
        %v2283 = vld [vmem:[#allocation6 + $0x158] sm:$0xff]
        %v2284 = vld [vmem:[#allocation6 + $0x160] sm:$0xff]
        %v2285 = vld [vmem:[#allocation6 + $0x168] sm:$0xff]
        %v2286 = vld [vmem:[#allocation6 + $0x170] sm:$0xff]
        %v2287 = vld [vmem:[#allocation6 + $0x178] sm:$0xff]
        %v2288 = vld [vmem:[#allocation6 + $0x180] sm:$0xff]
        %v2289 = vld [vmem:[#allocation6 + $0x188] sm:$0xff]
        %v2290 = vld [vmem:[#allocation6 + $0x190] sm:$0xff]
        %v2291 = vld [vmem:[#allocation6 + $0x198] sm:$0xff]
        %v2292 = vld [vmem:[#allocation6 + $0x1a0] sm:$0xff]
        %v2293 = vld [vmem:[#allocation6 + $0x1a8] sm:$0xff]
        %v2294 = vld [vmem:[#allocation6 + $0x1b0] sm:$0xff]
        %v2295 = vld [vmem:[#allocation6 + $0x1b8] sm:$0xff]
        %v2296 = vld [vmem:[#allocation6 + $0x1c0] sm:$0xff]
        %v2297 = vld [vmem:[#allocation6 + $0x1c8] sm:$0xff]
        %v2298 = vld [vmem:[#allocation6 + $0x1d0] sm:$0xff]
        %v2299 = vld [vmem:[#allocation6 + $0x1d8] sm:$0xff]
        %v2300 = vld [vmem:[#allocation6 + $0x1e0] sm:$0xff]
        %v2301 = vld [vmem:[#allocation6 + $0x1e8] sm:$0xff]
        %v2302 = vld [vmem:[#allocation6 + $0x1f0] sm:$0xff]
        %v2303 = vld [vmem:[#allocation6 + $0x1f8] sm:$0xff]
        %v2304 = vld [vmem:[#allocation6 + $0x200] sm:$0xff]
        %v2305 = vld [vmem:[#allocation6 + $0x208] sm:$0xff]
        %v2306 = vld [vmem:[#allocation6 + $0x210] sm:$0xff]
        %v2307 = vld [vmem:[#allocation6 + $0x218] sm:$0xff]
        %v2308 = vld [vmem:[#allocation6 + $0x220] sm:$0xff]
        %v2309 = vld [vmem:[#allocation6 + $0x228] sm:$0xff]
        %v2310 = vld [vmem:[#allocation6 + $0x230] sm:$0xff]
        %v2311 = vld [vmem:[#allocation6 + $0x238] sm:$0xff]
        %v2312 = vld [vmem:[#allocation6 + $0x240] sm:$0xff]
        %v2313 = vld [vmem:[#allocation6 + $0x248] sm:$0xff]
        %v2314 = vld [vmem:[#allocation6 + $0x250] sm:$0xff]
        %v2315 = vld [vmem:[#allocation6 + $0x258] sm:$0xff]
        %v2316 = vld [vmem:[#allocation6 + $0x260] sm:$0xff]
        %v2317 = vld [vmem:[#allocation6 + $0x268] sm:$0xff]
        %v2318 = vld [vmem:[#allocation6 + $0x270] sm:$0xff]
        %v2319 = vld [vmem:[#allocation6 + $0x278] sm:$0xff]
        %v2320 = vld [vmem:[#allocation6 + $0x280] sm:$0xff]
        %v2321 = vld [vmem:[#allocation6 + $0x288] sm:$0xff]
        %v2322 = vld [vmem:[#allocation6 + $0x290] sm:$0xff]
        %v2323 = vld [vmem:[#allocation6 + $0x298] sm:$0xff]
        %v2324 = vld [vmem:[#allocation6 + $0x2a0] sm:$0xff]
        %v2325 = vld [vmem:[#allocation6 + $0x2a8] sm:$0xff]
        %v2326 = vld [vmem:[#allocation6 + $0x2b0] sm:$0xff]
        %v2327 = vld [vmem:[#allocation6 + $0x2b8] sm:$0xff]
        %v2328 = vld [vmem:[#allocation6 + $0x2c0] sm:$0xff]
        %v2329 = vld [vmem:[#allocation6 + $0x2c8] sm:$0xff]
        %v2330 = vld [vmem:[#allocation6 + $0x2d0] sm:$0xff]
        %v2331 = vld [vmem:[#allocation6 + $0x2d8] sm:$0xff]
        %v2332 = vld [vmem:[#allocation6 + $0x2e0] sm:$0xff]
        %v2333 = vld [vmem:[#allocation6 + $0x2e8] sm:$0xff]
        %v2334 = vld [vmem:[#allocation6 + $0x2f0] sm:$0xff]
        %v2335 = vld [vmem:[#allocation6 + $0x2f8] sm:$0xff]
        %v2336 = vld [vmem:[%s6] sm:$0x3]
        %v2338 = vperm.slane %v2336, 0
        %v2339 = vperm.slane %v2336, 1
        %v2342 = vunpack.c.l.b16 %v2214
        %v2343 = vunpack.c.l.b16 %v2221
        %v2344 = vunpack.c.l.b16 %v2236
        %v2345 = vunpack.c.l.b16 %v2237
        %v2346 = vunpack.c.l.b16 %v2228
        %v2347 = vunpack.c.l.b16 %v2235
        %v2348 = vunpack.c.l.b16 %v2238
        %v2349 = vunpack.c.l.b16 %v2239
        %v2350 = vpack.c.b16 %v2196, %v2194
        %v2351 = vpack.c.b16 %v2197, %v2195
        %v2352 = vpack.c.b16 %v2346, %v2342
        %v2353 = vpack.c.b16 %v2347, %v2343
        %v2354 = vpack.c.b16 %v2348, %v2344
        %v2355 = vpack.c.b16 %v2349, %v2345
        %v2458 = vunpack.c.l.b16 %v2240
        %v2459 = vunpack.c.h.b16 %v2240
        %v2460 = vunpack.c.l.b16 %v2241
        %v2461 = vunpack.c.h.b16 %v2241
        %v2462 = vunpack.c.l.b16 %v2242
        %v2463 = vunpack.c.h.b16 %v2242
        %v2464 = vunpack.c.l.b16 %v2243
        %v2465 = vunpack.c.h.b16 %v2243
        %v2466 = vunpack.c.l.b16 %v2244
        %v2467 = vunpack.c.h.b16 %v2244
        %v2468 = vunpack.c.l.b16 %v2245
        %v2469 = vunpack.c.h.b16 %v2245
        %v2470 = vunpack.c.l.b16 %v2246
        %v2471 = vunpack.c.h.b16 %v2246
        %v2472 = vunpack.c.l.b16 %v2247
        %v2473 = vunpack.c.h.b16 %v2247
        %v2474 = vunpack.c.l.b16 %v2248
        %v2475 = vunpack.c.h.b16 %v2248
        %v2476 = vunpack.c.l.b16 %v2249
        %v2477 = vunpack.c.h.b16 %v2249
        %v2478 = vunpack.c.l.b16 %v2250
        %v2479 = vunpack.c.h.b16 %v2250
        %v2480 = vunpack.c.l.b16 %v2251
        %v2481 = vunpack.c.h.b16 %v2251
        %v2482 = vunpack.c.l.b16 %v2252
        %v2483 = vunpack.c.h.b16 %v2252
        %v2484 = vunpack.c.l.b16 %v2253
        %v2485 = vunpack.c.h.b16 %v2253
        %v2486 = vunpack.c.l.b16 %v2254
        %v2487 = vunpack.c.h.b16 %v2254
        %v2488 = vunpack.c.l.b16 %v2255
        %v2489 = vunpack.c.h.b16 %v2255
        %v2490 = vunpack.c.l.b16 %v2256
        %v2491 = vunpack.c.h.b16 %v2256
        %v2492 = vunpack.c.l.b16 %v2257
        %v2493 = vunpack.c.h.b16 %v2257
        %v2494 = vunpack.c.l.b16 %v2258
        %v2495 = vunpack.c.h.b16 %v2258
        %v2496 = vunpack.c.l.b16 %v2259
        %v2497 = vunpack.c.h.b16 %v2259
        %v2498 = vunpack.c.l.b16 %v2260
        %v2499 = vunpack.c.h.b16 %v2260
        %v2500 = vunpack.c.l.b16 %v2261
        %v2501 = vunpack.c.h.b16 %v2261
        %v2502 = vunpack.c.l.b16 %v2262
        %v2503 = vunpack.c.h.b16 %v2262
        %v2504 = vunpack.c.l.b16 %v2263
        %v2505 = vunpack.c.h.b16 %v2263
        %v2506 = vunpack.c.l.b16 %v2264
        %v2507 = vunpack.c.h.b16 %v2264
        %v2508 = vunpack.c.l.b16 %v2265
        %v2509 = vunpack.c.h.b16 %v2265
        %v2510 = vunpack.c.l.b16 %v2266
        %v2511 = vunpack.c.h.b16 %v2266
        %v2512 = vunpack.c.l.b16 %v2267
        %v2513 = vunpack.c.h.b16 %v2267
        %v2514 = vunpack.c.l.b16 %v2268
        %v2515 = vunpack.c.h.b16 %v2268
        %v2516 = vunpack.c.l.b16 %v2269
        %v2517 = vunpack.c.h.b16 %v2269
        %v2518 = vunpack.c.l.b16 %v2270
        %v2519 = vunpack.c.h.b16 %v2270
        %v2520 = vunpack.c.l.b16 %v2271
        %v2521 = vunpack.c.h.b16 %v2271
        %v2522 = vunpack.c.l.b16 %v2272
        %v2523 = vunpack.c.h.b16 %v2272
        %v2524 = vunpack.c.l.b16 %v2273
        %v2525 = vunpack.c.h.b16 %v2273
        %v2526 = vunpack.c.l.b16 %v2274
        %v2527 = vunpack.c.h.b16 %v2274
        %v2528 = vunpack.c.l.b16 %v2275
        %v2529 = vunpack.c.h.b16 %v2275
        %v2530 = vunpack.c.l.b16 %v2276
        %v2531 = vunpack.c.h.b16 %v2276
        %v2532 = vunpack.c.l.b16 %v2277
        %v2533 = vunpack.c.h.b16 %v2277
        %v2534 = vunpack.c.l.b16 %v2278
        %v2535 = vunpack.c.h.b16 %v2278
        %v2536 = vunpack.c.l.b16 %v2279
        %v2537 = vunpack.c.h.b16 %v2279
        %v2538 = vunpack.c.l.b16 %v2280
        %v2539 = vunpack.c.h.b16 %v2280
        %v2540 = vunpack.c.l.b16 %v2281
        %v2541 = vunpack.c.h.b16 %v2281
        %v2542 = vunpack.c.l.b16 %v2282
        %v2543 = vunpack.c.h.b16 %v2282
        %v2544 = vunpack.c.l.b16 %v2283
        %v2545 = vunpack.c.h.b16 %v2283
        %v2546 = vunpack.c.l.b16 %v2284
        %v2547 = vunpack.c.h.b16 %v2284
        %v2548 = vunpack.c.l.b16 %v2285
        %v2549 = vunpack.c.h.b16 %v2285
        %v2550 = vunpack.c.l.b16 %v2286
        %v2551 = vunpack.c.h.b16 %v2286
        %v2552 = vunpack.c.l.b16 %v2287
        %v2553 = vunpack.c.h.b16 %v2287
        %v2554 = vunpack.c.l.b16 %v2288
        %v2555 = vunpack.c.h.b16 %v2288
        %v2556 = vunpack.c.l.b16 %v2289
        %v2557 = vunpack.c.h.b16 %v2289
        %v2558 = vunpack.c.l.b16 %v2290
        %v2559 = vunpack.c.h.b16 %v2290
        %v2560 = vunpack.c.l.b16 %v2291
        %v2561 = vunpack.c.h.b16 %v2291
        %v2562 = vunpack.c.l.b16 %v2292
        %v2563 = vunpack.c.h.b16 %v2292
        %v2564 = vunpack.c.l.b16 %v2293
        %v2565 = vunpack.c.h.b16 %v2293
        %v2566 = vunpack.c.l.b16 %v2294
        %v2567 = vunpack.c.h.b16 %v2294
        %v2568 = vunpack.c.l.b16 %v2295
        %v2569 = vunpack.c.h.b16 %v2295
        %v2570 = vunpack.c.l.b16 %v2296
        %v2571 = vunpack.c.h.b16 %v2296
        %v2572 = vunpack.c.l.b16 %v2297
        %v2573 = vunpack.c.h.b16 %v2297
        %v2574 = vunpack.c.l.b16 %v2298
        %v2575 = vunpack.c.h.b16 %v2298
        %v2576 = vunpack.c.l.b16 %v2299
        %v2577 = vunpack.c.h.b16 %v2299
        %v2578 = vunpack.c.l.b16 %v2300
        %v2579 = vunpack.c.h.b16 %v2300
        %v2580 = vunpack.c.l.b16 %v2301
        %v2581 = vunpack.c.h.b16 %v2301
        %v2582 = vunpack.c.l.b16 %v2302
        %v2583 = vunpack.c.h.b16 %v2302
        %v2584 = vunpack.c.l.b16 %v2303
        %v2585 = vunpack.c.h.b16 %v2303
        %v2586 = vunpack.c.l.b16 %v2304
        %v2587 = vunpack.c.h.b16 %v2304
        %v2588 = vunpack.c.l.b16 %v2305
        %v2589 = vunpack.c.h.b16 %v2305
        %v2590 = vunpack.c.l.b16 %v2306
        %v2591 = vunpack.c.h.b16 %v2306
        %v2592 = vunpack.c.l.b16 %v2307
        %v2593 = vunpack.c.h.b16 %v2307
        %v2594 = vunpack.c.l.b16 %v2308
        %v2595 = vunpack.c.h.b16 %v2308
        %v2596 = vunpack.c.l.b16 %v2309
        %v2597 = vunpack.c.h.b16 %v2309
        %v2598 = vunpack.c.l.b16 %v2310
        %v2599 = vunpack.c.h.b16 %v2310
        %v2600 = vunpack.c.l.b16 %v2311
        %v2601 = vunpack.c.h.b16 %v2311
        %v2602 = vunpack.c.l.b16 %v2312
        %v2603 = vunpack.c.h.b16 %v2312
        %v2604 = vunpack.c.l.b16 %v2313
        %v2605 = vunpack.c.h.b16 %v2313
        %v2606 = vunpack.c.l.b16 %v2314
        %v2607 = vunpack.c.h.b16 %v2314
        %v2608 = vunpack.c.l.b16 %v2315
        %v2609 = vunpack.c.h.b16 %v2315
        %v2610 = vunpack.c.l.b16 %v2316
        %v2611 = vunpack.c.h.b16 %v2316
        %v2612 = vunpack.c.l.b16 %v2317
        %v2613 = vunpack.c.h.b16 %v2317
        %v2614 = vunpack.c.l.b16 %v2318
        %v2615 = vunpack.c.h.b16 %v2318
        %v2616 = vunpack.c.l.b16 %v2319
        %v2617 = vunpack.c.h.b16 %v2319
        %v2618 = vunpack.c.l.b16 %v2320
        %v2619 = vunpack.c.h.b16 %v2320
        %v2620 = vunpack.c.l.b16 %v2321
        %v2621 = vunpack.c.h.b16 %v2321
        %v2622 = vunpack.c.l.b16 %v2322
        %v2623 = vunpack.c.h.b16 %v2322
        %v2624 = vunpack.c.l.b16 %v2323
        %v2625 = vunpack.c.h.b16 %v2323
        %v2626 = vunpack.c.l.b16 %v2324
        %v2627 = vunpack.c.h.b16 %v2324
        %v2628 = vunpack.c.l.b16 %v2325
        %v2629 = vunpack.c.h.b16 %v2325
        %v2630 = vunpack.c.l.b16 %v2326
        %v2631 = vunpack.c.h.b16 %v2326
        %v2632 = vunpack.c.l.b16 %v2327
        %v2633 = vunpack.c.h.b16 %v2327
        %v2634 = vunpack.c.l.b16 %v2328
        %v2635 = vunpack.c.h.b16 %v2328
        %v2636 = vunpack.c.l.b16 %v2329
        %v2637 = vunpack.c.h.b16 %v2329
        %v2638 = vunpack.c.l.b16 %v2330
        %v2639 = vunpack.c.h.b16 %v2330
        %v2640 = vunpack.c.l.b16 %v2331
        %v2641 = vunpack.c.h.b16 %v2331
        %v2642 = vunpack.c.l.b16 %v2332
        %v2643 = vunpack.c.h.b16 %v2332
        %v2644 = vunpack.c.l.b16 %v2333
        %v2645 = vunpack.c.h.b16 %v2333
        %v2646 = vunpack.c.l.b16 %v2334
        %v2647 = vunpack.c.h.b16 %v2334
        %v2648 = vunpack.c.l.b16 %v2335
        %v2649 = vunpack.c.h.b16 %v2335
        %v2650 = vpack.c.b16 %v2460, %v2458
        %v2651 = vpack.c.b16 %v2461, %v2459
        %v2652 = vpack.c.b16 %v2464, %v2462
        %v2653 = vpack.c.b16 %v2465, %v2463
        %v2654 = vpack.c.b16 %v2468, %v2466
        %v2655 = vpack.c.b16 %v2469, %v2467
        %v2656 = vpack.c.b16 %v2472, %v2470
        %v2657 = vpack.c.b16 %v2473, %v2471
        %v2658 = vpack.c.b16 %v2476, %v2474
        %v2659 = vpack.c.b16 %v2477, %v2475
        %v2660 = vpack.c.b16 %v2480, %v2478
        %v2661 = vpack.c.b16 %v2481, %v2479
        %v2662 = vpack.c.b16 %v2484, %v2482
        %v2663 = vpack.c.b16 %v2485, %v2483
        %v2664 = vpack.c.b16 %v2488, %v2486
        %v2665 = vpack.c.b16 %v2489, %v2487
        %v2666 = vpack.c.b16 %v2492, %v2490
        %v2667 = vpack.c.b16 %v2493, %v2491
        %v2668 = vpack.c.b16 %v2496, %v2494
        %v2669 = vpack.c.b16 %v2497, %v2495
        %v2670 = vpack.c.b16 %v2500, %v2498
        %v2671 = vpack.c.b16 %v2501, %v2499
        %v2672 = vpack.c.b16 %v2504, %v2502
        %v2673 = vpack.c.b16 %v2505, %v2503
        %v2674 = vpack.c.b16 %v2508, %v2506
        %v2675 = vpack.c.b16 %v2509, %v2507
        %v2676 = vpack.c.b16 %v2512, %v2510
        %v2677 = vpack.c.b16 %v2513, %v2511
        %v2678 = vpack.c.b16 %v2516, %v2514
        %v2679 = vpack.c.b16 %v2517, %v2515
        %v2680 = vpack.c.b16 %v2520, %v2518
        %v2681 = vpack.c.b16 %v2521, %v2519
        %v2682 = vpack.c.b16 %v2524, %v2522
        %v2683 = vpack.c.b16 %v2525, %v2523
        %v2684 = vpack.c.b16 %v2528, %v2526
        %v2685 = vpack.c.b16 %v2529, %v2527
        %v2686 = vpack.c.b16 %v2532, %v2530
        %v2687 = vpack.c.b16 %v2533, %v2531
        %v2688 = vpack.c.b16 %v2536, %v2534
        %v2689 = vpack.c.b16 %v2537, %v2535
        %v2690 = vpack.c.b16 %v2540, %v2538
        %v2691 = vpack.c.b16 %v2541, %v2539
        %v2692 = vpack.c.b16 %v2544, %v2542
        %v2693 = vpack.c.b16 %v2545, %v2543
        %v2694 = vpack.c.b16 %v2548, %v2546
        %v2695 = vpack.c.b16 %v2549, %v2547
        %v2696 = vpack.c.b16 %v2552, %v2550
        %v2697 = vpack.c.b16 %v2553, %v2551
        %v2698 = vpack.c.b16 %v2556, %v2554
        %v2699 = vpack.c.b16 %v2557, %v2555
        %v2700 = vpack.c.b16 %v2560, %v2558
        %v2701 = vpack.c.b16 %v2561, %v2559
        %v2702 = vpack.c.b16 %v2564, %v2562
        %v2703 = vpack.c.b16 %v2565, %v2563
        %v2704 = vpack.c.b16 %v2568, %v2566
        %v2705 = vpack.c.b16 %v2569, %v2567
        %v2706 = vpack.c.b16 %v2572, %v2570
        %v2707 = vpack.c.b16 %v2573, %v2571
        %v2708 = vpack.c.b16 %v2576, %v2574
        %v2709 = vpack.c.b16 %v2577, %v2575
        %v2710 = vpack.c.b16 %v2580, %v2578
        %v2711 = vpack.c.b16 %v2581, %v2579
        %v2712 = vpack.c.b16 %v2584, %v2582
        %v2713 = vpack.c.b16 %v2585, %v2583
        %v2714 = vpack.c.b16 %v2588, %v2586
        %v2715 = vpack.c.b16 %v2589, %v2587
        %v2716 = vpack.c.b16 %v2592, %v2590
        %v2717 = vpack.c.b16 %v2593, %v2591
        %v2718 = vpack.c.b16 %v2596, %v2594
        %v2719 = vpack.c.b16 %v2597, %v2595
        %v2720 = vpack.c.b16 %v2600, %v2598
        %v2721 = vpack.c.b16 %v2601, %v2599
        %v2722 = vpack.c.b16 %v2604, %v2602
        %v2723 = vpack.c.b16 %v2605, %v2603
        %v2724 = vpack.c.b16 %v2608, %v2606
        %v2725 = vpack.c.b16 %v2609, %v2607
        %v2726 = vpack.c.b16 %v2612, %v2610
        %v2727 = vpack.c.b16 %v2613, %v2611
        %v2728 = vpack.c.b16 %v2616, %v2614
        %v2729 = vpack.c.b16 %v2617, %v2615
        %v2730 = vpack.c.b16 %v2620, %v2618
        %v2731 = vpack.c.b16 %v2621, %v2619
        %v2732 = vpack.c.b16 %v2624, %v2622
        %v2733 = vpack.c.b16 %v2625, %v2623
        %v2734 = vpack.c.b16 %v2628, %v2626
        %v2735 = vpack.c.b16 %v2629, %v2627
        %v2736 = vpack.c.b16 %v2632, %v2630
        %v2737 = vpack.c.b16 %v2633, %v2631
        %v2738 = vpack.c.b16 %v2636, %v2634
        %v2739 = vpack.c.b16 %v2637, %v2635
        %v2740 = vpack.c.b16 %v2640, %v2638
        %v2741 = vpack.c.b16 %v2641, %v2639
        %v2742 = vpack.c.b16 %v2644, %v2642
        %v2743 = vpack.c.b16 %v2645, %v2643
        %v2744 = vpack.c.b16 %v2648, %v2646
        %v2745 = vpack.c.b16 %v2649, %v2647
        %2842 = vmatpush.bf16.msra.mxu0 %v2664
        %2843 = vmatpush.bf16.msra.mxu0 %v2662
        %2844 = vmatpush.bf16.msra.mxu0 %v2660
        %2845 = vmatpush.bf16.msra.mxu0 %v2658
        %2846 = vmatpush.bf16.msra.mxu0 %v2656
        %2847 = vmatpush.bf16.msra.mxu0 %v2654
        %2848 = vmatpush.bf16.msra.mxu0 %v2652
        %2849 = vmatpush.bf16.msra.mxu0 %v2650
        %2850 = vmatmul.bf16.gmra.mxu0 %v2350
        %v2851 = vpop.f32.mrf.mxu0
        %v2852 = vadd.f32 %v2338, %v2851
        %v2853 = vpop.f32.mrf.mxu0
        %v2854 = vadd.f32 %v2338, %v2853
        %2855 = vdwg.mxu0
        %2856 = vmatpush.bf16.msra.mxu0 %v2680
        %2857 = vmatpush.bf16.msra.mxu0 %v2678
        %2858 = vmatpush.bf16.msra.mxu0 %v2676
        %2859 = vmatpush.bf16.msra.mxu0 %v2674
        %2860 = vmatpush.bf16.msra.mxu0 %v2672
        %2861 = vmatpush.bf16.msra.mxu0 %v2670
        %2862 = vmatpush.bf16.msra.mxu0 %v2668
        %2863 = vmatpush.bf16.msra.mxu0 %v2666
        %2864 = vmatmul.bf16.gmra.mxu0 %v2351
        %v2865 = vpop.f32.mrf.mxu0
        %v2866 = vadd.f32 %v2852, %v2865
        %v2867 = vpop.f32.mrf.mxu0
        %v2868 = vadd.f32 %v2854, %v2867
        %2869 = vdwg.mxu0
        %2870 = vmatpush.bf16.msra.mxu0 %v2696
        %2871 = vmatpush.bf16.msra.mxu0 %v2694
        %2872 = vmatpush.bf16.msra.mxu0 %v2692
        %2873 = vmatpush.bf16.msra.mxu0 %v2690
        %2874 = vmatpush.bf16.msra.mxu0 %v2688
        %2875 = vmatpush.bf16.msra.mxu0 %v2686
        %2876 = vmatpush.bf16.msra.mxu0 %v2684
        %2877 = vmatpush.bf16.msra.mxu0 %v2682
        %2878 = vmatmul.bf16.gmra.mxu0 %v2352
        %v2879 = vpop.f32.mrf.mxu0
        %v2880 = vadd.f32 %v2866, %v2879
        %v2881 = vpop.f32.mrf.mxu0
        %v2882 = vadd.f32 %v2868, %v2881
        %2883 = vdwg.mxu0
        %2884 = vmatpush.bf16.msra.mxu0 %v2712
        %2885 = vmatpush.bf16.msra.mxu0 %v2710
        %2886 = vmatpush.bf16.msra.mxu0 %v2708
        %2887 = vmatpush.bf16.msra.mxu0 %v2706
        %2888 = vmatpush.bf16.msra.mxu0 %v2704
        %2889 = vmatpush.bf16.msra.mxu0 %v2702
        %2890 = vmatpush.bf16.msra.mxu0 %v2700
        %2891 = vmatpush.bf16.msra.mxu0 %v2698
        %2892 = vmatmul.bf16.gmra.mxu0 %v2353
        %v2893 = vpop.f32.mrf.mxu0
        %v2894 = vadd.f32 %v2880, %v2893
        %v2895 = vpop.f32.mrf.mxu0
        %v2896 = vadd.f32 %v2882, %v2895
        %2897 = vdwg.mxu0
        %2898 = vmatpush.bf16.msra.mxu0 %v2728
        %2899 = vmatpush.bf16.msra.mxu0 %v2726
        %2900 = vmatpush.bf16.msra.mxu0 %v2724
        %2901 = vmatpush.bf16.msra.mxu0 %v2722
        %2902 = vmatpush.bf16.msra.mxu0 %v2720
        %2903 = vmatpush.bf16.msra.mxu0 %v2718
        %2904 = vmatpush.bf16.msra.mxu0 %v2716
        %2905 = vmatpush.bf16.msra.mxu0 %v2714
        %2906 = vmatmul.bf16.gmra.mxu0 %v2354
        %v2907 = vpop.f32.mrf.mxu0
        %v2908 = vadd.f32 %v2894, %v2907
        %v2909 = vpop.f32.mrf.mxu0
        %v2910 = vadd.f32 %v2896, %v2909
        %2911 = vdwg.mxu0
        %2912 = vmatpush.bf16.msra.mxu0 %v2744
        %2913 = vmatpush.bf16.msra.mxu0 %v2742
        %2914 = vmatpush.bf16.msra.mxu0 %v2740
        %2915 = vmatpush.bf16.msra.mxu0 %v2738
        %2916 = vmatpush.bf16.msra.mxu0 %v2736
        %2917 = vmatpush.bf16.msra.mxu0 %v2734
        %2918 = vmatpush.bf16.msra.mxu0 %v2732
        %2919 = vmatpush.bf16.msra.mxu0 %v2730
        %2920 = vmatmul.bf16.gmra.mxu0 %v2355
        %v2921 = vpop.f32.mrf.mxu0
        %v2922 = vadd.f32 %v2908, %v2921
        %v2923 = vpop.f32.mrf.mxu0
        %v2924 = vadd.f32 %v2910, %v2923
        %2925 = vdwg.mxu0
        %2926 = vmatpush.bf16.msra.mxu0 %v2665
        %2927 = vmatpush.bf16.msra.mxu0 %v2663
        %2928 = vmatpush.bf16.msra.mxu0 %v2661
        %2929 = vmatpush.bf16.msra.mxu0 %v2659
        %2930 = vmatpush.bf16.msra.mxu0 %v2657
        %2931 = vmatpush.bf16.msra.mxu0 %v2655
        %2932 = vmatpush.bf16.msra.mxu0 %v2653
        %2933 = vmatpush.bf16.msra.mxu0 %v2651
        %2934 = vmatmul.bf16.gmra.mxu0 %v2350
        %v2935 = vpop.f32.mrf.mxu0
        %v2936 = vadd.f32 %v2339, %v2935
        %v2937 = vpop.f32.mrf.mxu0
        %v2938 = vadd.f32 %v2339, %v2937
        %2939 = vdwg.mxu0
        %2940 = vmatpush.bf16.msra.mxu0 %v2681
        %2941 = vmatpush.bf16.msra.mxu0 %v2679
        %2942 = vmatpush.bf16.msra.mxu0 %v2677
        %2943 = vmatpush.bf16.msra.mxu0 %v2675
        %2944 = vmatpush.bf16.msra.mxu0 %v2673
        %2945 = vmatpush.bf16.msra.mxu0 %v2671
        %2946 = vmatpush.bf16.msra.mxu0 %v2669
        %2947 = vmatpush.bf16.msra.mxu0 %v2667
        %2948 = vmatmul.bf16.gmra.mxu0 %v2351
        %v2949 = vpop.f32.mrf.mxu0
        %v2950 = vadd.f32 %v2936, %v2949
        %v2951 = vpop.f32.mrf.mxu0
        %v2952 = vadd.f32 %v2938, %v2951
        %2953 = vdwg.mxu0
        %2954 = vmatpush.bf16.msra.mxu0 %v2697
        %2955 = vmatpush.bf16.msra.mxu0 %v2695
        %2956 = vmatpush.bf16.msra.mxu0 %v2693
        %2957 = vmatpush.bf16.msra.mxu0 %v2691
        %2958 = vmatpush.bf16.msra.mxu0 %v2689
        %2959 = vmatpush.bf16.msra.mxu0 %v2687
        %2960 = vmatpush.bf16.msra.mxu0 %v2685
        %2961 = vmatpush.bf16.msra.mxu0 %v2683
        %2962 = vmatmul.bf16.gmra.mxu0 %v2352
        %v2963 = vpop.f32.mrf.mxu0
        %v2964 = vadd.f32 %v2950, %v2963
        %v2965 = vpop.f32.mrf.mxu0
        %v2966 = vadd.f32 %v2952, %v2965
        %2967 = vdwg.mxu0
        %2968 = vmatpush.bf16.msra.mxu0 %v2713
        %2969 = vmatpush.bf16.msra.mxu0 %v2711
        %2970 = vmatpush.bf16.msra.mxu0 %v2709
        %2971 = vmatpush.bf16.msra.mxu0 %v2707
        %2972 = vmatpush.bf16.msra.mxu0 %v2705
        %2973 = vmatpush.bf16.msra.mxu0 %v2703
        %2974 = vmatpush.bf16.msra.mxu0 %v2701
        %2975 = vmatpush.bf16.msra.mxu0 %v2699
        %2976 = vmatmul.bf16.gmra.mxu0 %v2353
        %v2977 = vpop.f32.mrf.mxu0
        %v2978 = vadd.f32 %v2964, %v2977
        %v2979 = vpop.f32.mrf.mxu0
        %v2980 = vadd.f32 %v2966, %v2979
        %2981 = vdwg.mxu0
        %2982 = vmatpush.bf16.msra.mxu0 %v2729
        %2983 = vmatpush.bf16.msra.mxu0 %v2727
        %2984 = vmatpush.bf16.msra.mxu0 %v2725
        %2985 = vmatpush.bf16.msra.mxu0 %v2723
        %2986 = vmatpush.bf16.msra.mxu0 %v2721
        %2987 = vmatpush.bf16.msra.mxu0 %v2719
        %2988 = vmatpush.bf16.msra.mxu0 %v2717
        %2989 = vmatpush.bf16.msra.mxu0 %v2715
        %2990 = vmatmul.bf16.gmra.mxu0 %v2354
        %v2991 = vpop.f32.mrf.mxu0
        %v2992 = vadd.f32 %v2978, %v2991
        %v2993 = vpop.f32.mrf.mxu0
        %v2994 = vadd.f32 %v2980, %v2993
        %2995 = vdwg.mxu0
        %2996 = vmatpush.bf16.msra.mxu0 %v2745
        %2997 = vmatpush.bf16.msra.mxu0 %v2743
        %2998 = vmatpush.bf16.msra.mxu0 %v2741
        %2999 = vmatpush.bf16.msra.mxu0 %v2739
        %3000 = vmatpush.bf16.msra.mxu0 %v2737
        %3001 = vmatpush.bf16.msra.mxu0 %v2735
        %3002 = vmatpush.bf16.msra.mxu0 %v2733
        %3003 = vmatpush.bf16.msra.mxu0 %v2731
        %3004 = vmatmul.bf16.gmra.mxu0 %v2355
        %v3005 = vpop.f32.mrf.mxu0
        %v3006 = vadd.f32 %v2992, %v3005
        %v3007 = vpop.f32.mrf.mxu0
        %v3008 = vadd.f32 %v2994, %v3007
        %3009 = vdwg.mxu0
        %v3010 = vld [vmem:[%s7] sm:$0x3]
        %v3012 = vperm.slane %v3010, 0
        %v3013 = vperm.slane %v3010, 1
        %v3016 = vmul.f32 %v2922, %v3012
        %v3017 = vmul.f32 %v3006, %v3013
        %v3018 = vmul.f32 %v2924, %v3012
        %v3019 = vmul.f32 %v3008, %v3013
        %v3020 = vld [vmem:[%s8] sm:$0x3]
        %v3022 = vperm.slane %v3020, 0
        %v3023 = vperm.slane %v3020, 1
        %v3026 = vadd.f32 %v3016, %v3022
        %v3027 = vadd.f32 %v3017, %v3023
        %v3028 = vadd.f32 %v3018, %v3022
        %v3029 = vadd.f32 %v3019, %v3023
        %vm3030 = vcmp.lt.f32.partialorder %v2922, 0.0
        %vm3031 = vcmp.lt.f32.partialorder %v2924, 0.0
        %vm3032 = vcmp.lt.f32.partialorder %v3006, 0.0
        %vm3033 = vcmp.lt.f32.partialorder %v3008, 0.0
        %v3034 = vld [vmem:[%s9] sm:$0x3]
        %vm3035 = vcmp.gt.f32.partialorder %v3034, 0.0
        %v3036 = vsel %vm3035, 1, 0
        %v3037 = vperm.slane %v3036, 0
        %v3038 = vperm.slane %v3036, 1
        %vm3039 = vcmp.eq.s32.totalorder %v3037, 1
        %vm3040 = vcmp.eq.s32.totalorder %v3038, 1
        %v3041 = vsel %vm3030, 1, 0
        %v3042 = vsel %vm3031, 1, 0
        %3043 = vset.pattern.permute.xlu0 0
        %3044 = vperm.xlu0 %3043, %v3041
        %v3045 = vpop.permute.xlu0 %3044
        %3046 = vset.pattern.permute.xlu0 0
        %3047 = vperm.xlu0 %3046, %v3042
        %v3048 = vpop.permute.xlu0 %3047
        %vm3049 = vcmp.eq.s32.totalorder %v3045, 1
        %vm3050 = vcmp.eq.s32.totalorder %v3048, 1
        %vm3051 = vmand %vm3039, %vm3049
        %vm3052 = vmand %vm3040, %vm3049
        %vm3053 = vmand %vm3039, %vm3050
        %vm3054 = vmand %vm3040, %vm3050
        %v3055 = vld [vmem:[%s10] sm:$0x3]
        %vm3056 = vcmp.gt.f32.partialorder %v3055, 0.0
        %v3057 = vsel %vm3056, 1, 0
        %v3058 = vperm.slane %v3057, 0
        %v3059 = vperm.slane %v3057, 1
        %vm3060 = vcmp.eq.s32.totalorder %v3058, 1
        %vm3061 = vcmp.eq.s32.totalorder %v3059, 1
        %v3062 = vsel %vm3032, 1, 0
        %v3063 = vsel %vm3033, 1, 0
        %3064 = vset.pattern.permute.xlu0 0
        %3065 = vperm.xlu0 %3064, %v3062
        %v3066 = vpop.permute.xlu0 %3065
        %3067 = vset.pattern.permute.xlu0 0
        %3068 = vperm.xlu0 %3067, %v3063
        %v3069 = vpop.permute.xlu0 %3068
        %vm3070 = vcmp.eq.s32.totalorder %v3066, 1
        %vm3071 = vcmp.eq.s32.totalorder %v3069, 1
        %vm3072 = vmand %vm3060, %vm3070
        %vm3073 = vmand %vm3061, %vm3070
        %vm3074 = vmand %vm3060, %vm3071
        %vm3075 = vmand %vm3061, %vm3071
        %vm3076 = vmor %vm3051, %vm3072
        %vm3077 = vmor %vm3052, %vm3073
        %vm3078 = vmor %vm3053, %vm3074
        %vm3079 = vmor %vm3054, %vm3075
        %v3080 = vsel %vm3076, 0.0, %v3026
        %v3081 = vsel %vm3077, 0.0, %v3027
        %v3082 = vsel %vm3078, 0.0, %v3028
        %v3083 = vsel %vm3079, 0.0, %v3029
        %3084 = vst [vmem:[%s410] sm:$0xff] %v3080
        %3085 = vst [vmem:[%s410 + $0x8] sm:$0xff] %v3081
        %3086 = vst [vmem:[%s410 + $0x10] sm:$0xff] %v3082
        %3087 = vst [vmem:[%s410 + $0x18] sm:$0xff] %v3083
        %s3088 = sand.u32 %s263, 1
        %s3089 = sand.u32 %s263, 1
        %s3090 = smul.addr %s3089, 32
        %s3091 = scalar_lea.vmem [#allocation7], %s3090
        // Predicated region
        $region77: #{predict.1} parent=63 // pred_check
          %p3092 = pneg %p273
        $region78: #{predict.1} parent=63 // pred_check_branch
          %3094 = sbr.rel (%p3092) target = $region80
        $region79: #{predict.1} parent=63 // pred_region
          %s3095 = smul.addr %s24, 2
          %s3096 = smul.addr %s3095, 8
          %s3097 = scalar_lea.vmem %s11, %s3096
          // Predicated region
          $region81: #{predict.1} parent=79 // pred_check
            _
          $region82: #{predict.1} parent=79 // pred_check_branch
            %3099 = sbr.rel (0) target = $region84
          $region83: #{predict.1} parent=79 // pred_region
            // Predicated region
            $region85: #{predict.1} parent=83 // pred_check
              _
            $region86: #{predict.1} parent=83 // pred_check_branch
              %3101 = sbr.rel (0) target = $region88
            $region87: #{predict.1} parent=83 // pred_region
              loop: start=0, step=1, limit=1
              $region89: #{predict.1} parent=87 // loop_pre_header
                _
              $region90: #{predict.1} parent=87 // loop_header
                %s3103 = sphi 0, %s3107
                %p3104 = scmp.ge.s32.totalorder %s3103, 1
                %s3108 = sphi %s3091, %s3091
                %s3109 = sphi %s3097, %s3097
              $region91: #{predict.1} parent=87 // loop_header_branch
                %3106 = sbr.rel (%p3104) target = $region95
              $region92: #{predict.1} parent=87 // loop_body
                %v3110 = vld [vmem:[%s3108] sm:$0xff]
                %3111 = vst [vmem:[%s3109] sm:$0xff] %v3110
                %v3112 = vld [vmem:[%s3108 + $0x8] sm:$0xff]
                %3113 = vst [vmem:[%s3109 + $0x8] sm:$0xff] %v3112
                %v3114 = vld [vmem:[%s3108 + $0x10] sm:$0xff]
                %3115 = vst [vmem:[%s3109 + $0x20] sm:$0xff] %v3114
                %v3116 = vld [vmem:[%s3108 + $0x18] sm:$0xff]
                %3117 = vst [vmem:[%s3109 + $0x28] sm:$0xff] %v3116
              $region93: #{predict.1} parent=87 // loop_footer
                %s3107 = sadd.s32 1, %s3103
              $region94: #{predict.1} parent=87 // loop_footer_branch
                %3102 = sbr.rel target = $region90
              $region95: #{predict.1} parent=87 // loop_exit
                _
            $region88: #{predict.1} parent=83 // pred_fallthru
              _
            // Predicated region
            $region96: #{predict.1} parent=83 // pred_check
              _
            $region97: #{predict.1} parent=83 // pred_check_branch
              %3119 = sbr.rel target = $region99
            $region98: #{predict.1} parent=83 // pred_region
              _
            $region99: #{predict.1} parent=83 // pred_fallthru
              _
          $region84: #{predict.1} parent=79 // pred_fallthru
            _
          %3120 = vnop
        $region80: #{predict.1} parent=63 // pred_fallthru
          _
      $region64: #{predict.1} parent=5 // pred_fallthru
        _
      %p3121 = scmp.le.s32.totalorder 2, %s19
      // Predicated region
      $region100: #{predict.1} parent=5 // pred_check
        %p3122 = pneg %p3121
      $region101: #{predict.1} parent=5 // pred_check_branch
        %3124 = sbr.rel (%p3122) target = $region103
      $region102: #{predict.1} parent=5 // pred_region
        %s3125 = ssub.s32 %s19, 2
        // Predicated region
        $region104: #{predict.1} parent=102 // pred_check
          %p3126 = pneg %p279
        $region105: #{predict.1} parent=102 // pred_check_branch
          %3128 = sbr.rel (%p3126) target = $region107
        $region106: #{predict.1} parent=102 // pred_region
          %s3129 = sand.u32 %s264, 1
          %s3130 = sand.u32 %s264, 1
          %s3131 = smul.addr %s3130, 32
          %s3132 = scalar_lea.vmem [#allocation7], %s3131
        $region107: #{predict.1} parent=102 // pred_fallthru
          _
      $region103: #{predict.1} parent=5 // pred_fallthru
        _
    $region6: #{predict.1} parent=1 // loop_footer
      %s23 = sadd.s32 1, %s19
    $region7: #{predict.1} parent=1 // loop_footer_branch
      %18 = sbr.rel target = $region3
    $region8: #{predict.1} parent=1 // loop_exit
      _
    %3133 = vsyncpa [#allocation3], 1
    %s3134 = scalar_lea.sflag [#allocation3], 1
    %3135 = vsyncpa %s3134, 1
    %3136 = vsyncpa [#allocation5], 1

</llo_original>
